<compile_context>
chip_gen: v5e
topology: v5e:2x2
jax: 0.10.0
libtpu: 0.0.40
codegen_flags: <defaults>
</compile_context>

<pallas_src>
import functools

import jax
import jax.numpy as jnp
from jax import lax
from jax.experimental import pallas as pl
from jax.experimental.pallas import tpu as pltpu


def _round_up(x, m):
    return (x + m - 1) // m * m


def _vmem_limit_bytes(per_step_bytes):
    # ~2x for double buffering plus slack; clamp to [32 MiB, 64 MiB] so the
    # value is valid on v7x (64 MiB physical per TC) as well as v5e/v6e.
    est = 2 * per_step_bytes + (4 << 20)
    return int(min(max(est, 32 << 20), 64 << 20))


def _pick_row_tile(m, hw, max_bytes=4 << 20):
    """Largest multiple-of-8 divisor of m whose (rows, hw) f32 block fits budget."""
    cap = max(8, min(m, (max_bytes // (hw * 4)) // 8 * 8))
    tr = cap
    while tr > 8 and m % tr != 0:
        tr -= 8
    return max(tr, 8)


# ---------------------------------------------------------------------------
# Pass 1: 3x3 conv as 9 accumulated shifted-tap matmuls + per-image partial
# statistics (sum, sum-of-squares) per fout block.
# ---------------------------------------------------------------------------
def conv_stats_kernel(x_ref, w_ref, y_ref, ps_ref, pss_ref, *, H, W, KH, KW):
    # x_ref : (H+KH-1, W+KW-1, C)   one spatially padded NHWC image (no lane pad)
    # w_ref : (KH, KW, Fblk, C)     weights, fout padded/blocked
    # y_ref : (Fblk, H*W)           conv output, channels-first / spatial-last
    # ps_ref, pss_ref : (Fblk, 1)   per-image partial sum and sum-of-squares
    C = x_ref.shape[-1]
    HW = H * W
    acc = None
    # Hoist the kj (sublane-axis) shift out of the ki loop: only kj>0 slabs
    # pay a sublane re-layout; the ki slices are cheap leading-dim slices.
    for kj in range(KW):
        x_j = x_ref[:, kj:kj + W, :]                 # (Hp, W, C)
        for ki in range(KH):
            xs = x_j[ki:ki + H].reshape(HW, C)       # layout no-op (W % 8 == 0)
            # (Fblk, C) x (HW, C) contracted on C -> (Fblk, HW)   ("NT" matmul)
            contrib = lax.dot_general(
                w_ref[ki, kj], xs,
                dimension_numbers=(((1,), (1,)), ((), ())),
                preferred_element_type=jnp.float32)
            acc = contrib if acc is None else acc + contrib
    # Single store; stats computed from the live value (no y_ref RMW/reload).
    # TODO(synk): for very large Fblk x HW tiles switch acc to a VMEM scratch
    # accumulator (and row-tile the image with a halo) to bound vreg pressure.
    y_ref[...] = acc
    ps_ref[...] = jnp.sum(acc, axis=1, keepdims=True)
    pss_ref[...] = jnp.sum(acc * acc, axis=1, keepdims=True)


# ---------------------------------------------------------------------------
# Pass 2: fused BatchNorm affine (precomputed per-row scale/shift) +
# LeakyReLU(0.2), applied in place on large row tiles of the flattened output.
# ---------------------------------------------------------------------------
def bn_act_kernel(y_ref, scale_ref, shift_ref, o_ref, *, neg_slope):
    z = y_ref[...] * scale_ref[...] + shift_ref[...]       # (TR, HW) * (TR, 1)
    o_ref[...] = jnp.where(z > 0, z, neg_slope * z)


# ---------------------------------------------------------------------------
# Spectral norm of the conv weight (one power iteration).  Parameter
# preprocessing, kept as plain JAX glue.
# TODO(synk): PyTorch's spectral_norm keeps `u` as a persistent buffer; a
# fresh random u per call is a fidelity gap, not a kernel issue.
# ---------------------------------------------------------------------------
def spectral_normalize(w, key, n_iter=1, eps=1e-12):
    fout = w.shape[0]
    wm = w.reshape(fout, -1)
    u = jax.random.normal(key, (fout,), dtype=w.dtype)
    u = u / (jnp.linalg.norm(u) + eps)
    v = None
    for _ in range(n_iter):
        v = wm.T @ u
        v = v / (jnp.linalg.norm(v) + eps)
        u = wm @ v
        u = u / (jnp.linalg.norm(u) + eps)
    sigma = u @ (wm @ v)
    return w / sigma


def spade_conv2d(x, w, b, gamma, beta, *, eps=1e-5, neg_slope=0.2):
    """x: (N, C, H, W) f32; w: (fout, C, 3, 3); b/gamma/beta: (fout,)."""
    N, C, H, W = x.shape
    fout, fin, KH, KW = w.shape
    assert fin == C and KH == 3 and KW == 3
    assert W % 8 == 0  # keeps the in-kernel (H, W, C) -> (H*W, C) merge a layout no-op
    pad = 1
    HW = H * W

    # fout padding / blocking: one block if fout <= 256, else 256-wide blocks
    # (MXU-sized M tiles, bounded VMEM, and a second parallel grid axis).
    if fout > 256:
        Fblk = 256
        F8 = _round_up(fout, Fblk)
    else:
        F8 = _round_up(fout, 8)
        Fblk = F8
    nF = F8 // Fblk

    # Conv bias cancels exactly under training-mode BatchNorm; drop it.
    # (If eval-mode / running stats are ever used, the bias must be restored.)
    del b

    # --- one-time layout prep in XLA: spatial pad only, NO channel padding ---
    x_nhwc = jnp.transpose(x, (0, 2, 3, 1)).astype(jnp.float32)
    x_pad = jnp.pad(x_nhwc, ((0, 0), (pad, pad), (pad, pad), (0, 0)))
    Hp, Wp = H + 2 * pad, W + 2 * pad

    wt = jnp.transpose(w, (2, 3, 0, 1)).astype(jnp.float32)   # (KH, KW, fout, C)
    wt = jnp.pad(wt, ((0, 0), (0, 0), (0, F8 - fout), (0, 0)))

    # Per-step VMEM estimate (lane-padded) for the explicit scoped-VMEM limit.
    lanes_c = _round_up(C, 128)
    step1_bytes = (Hp * Wp * lanes_c + KH * KW * Fblk * lanes_c
                   + Fblk * HW + 2 * Fblk * 128) * 4

    # TODO(synk): for production H*W (e.g. 256x256) row-tile the image with a
    # 1-pixel halo so the per-step footprint stays inside v7x's 64 MiB VMEM.

    # --- pass 1: conv (9 taps) + per-image / per-fout-block partial stats ---
    y, ps, pss = pl.pallas_call(
        functools.partial(conv_stats_kernel, H=H, W=W, KH=KH, KW=KW),
        out_shape=(jax.ShapeDtypeStruct((N, F8, HW), jnp.float32),
                   jax.ShapeDtypeStruct((N, F8, 1), jnp.float32),
                   jax.ShapeDtypeStruct((N, F8, 1), jnp.float32)),
        grid_spec=pltpu.PrefetchScalarGridSpec(
            num_scalar_prefetch=0,
            grid=(N, nF),
            in_specs=[pl.BlockSpec((None, Hp, Wp, C), lambda n, f: (n, 0, 0, 0)),
                      pl.BlockSpec((KH, KW, Fblk, C), lambda n, f: (0, 0, f, 0))],
            out_specs=[pl.BlockSpec((None, Fblk, HW), lambda n, f: (n, f, 0)),
                       pl.BlockSpec((None, Fblk, 1), lambda n, f: (n, f, 0)),
                       pl.BlockSpec((None, Fblk, 1), lambda n, f: (n, f, 0))]),
        compiler_params=pltpu.CompilerParams(
            dimension_semantics=("parallel", "parallel"),
            vmem_limit_bytes=_vmem_limit_bytes(step1_bytes)),
    )(x_pad, wt)

    # --- fold partial stats -> per-channel scale/shift (tiny, plain JAX) ---
    # TODO(synk): E[y^2]-E[y]^2 in f32 can lose precision for large N*H*W;
    # switch to per-image centered partials if batch statistics get large.
    count = float(N * HW)
    mean = jnp.sum(ps, axis=0) / count                        # (F8, 1)
    var = jnp.maximum(jnp.sum(pss, axis=0) / count - mean * mean, 0.0)
    inv = lax.rsqrt(var + eps)
    gp = jnp.pad(gamma.astype(jnp.float32), (0, F8 - fout)).reshape(F8, 1)
    bp = jnp.pad(beta.astype(jnp.float32), (0, F8 - fout)).reshape(F8, 1)
    scale = gp * inv                                           # (F8, 1)
    shift = bp - mean * scale                                  # (F8, 1)

    # --- pass 2: in-place fma + LeakyReLU on large row tiles ---
    M2 = N * F8
    y2 = y.reshape(M2, HW)                                     # free reshape
    scale_full = jnp.tile(scale, (N, 1))                       # (M2, 1)
    shift_full = jnp.tile(shift, (N, 1))                       # (M2, 1)
    TR = _pick_row_tile(M2, HW)
    step2_bytes = 2 * TR * HW * 4 + 2 * TR * 128 * 4

    out2 = pl.pallas_call(
        functools.partial(bn_act_kernel, neg_slope=neg_slope),
        out_shape=jax.ShapeDtypeStruct((M2, HW), jnp.float32),
        grid_spec=pltpu.PrefetchScalarGridSpec(
            num_scalar_prefetch=0,
            grid=(M2 // TR,),
            in_specs=[pl.BlockSpec((TR, HW), lambda i: (i, 0)),
                      pl.BlockSpec((TR, 1), lambda i: (i, 0)),
                      pl.BlockSpec((TR, 1), lambda i: (i, 0))],
            out_specs=pl.BlockSpec((TR, HW), lambda i: (i, 0))),
        input_output_aliases={0: 0},
        compiler_params=pltpu.CompilerParams(
            dimension_semantics=("parallel",),
            vmem_limit_bytes=_vmem_limit_bytes(step2_bytes)),
    )(y2, scale_full, shift_full)

    # (N*F8, HW) -> (N, fout, H, W): free reshapes, no XLA transpose pass.
    return out2.reshape(N, F8, HW)[:, :fout, :].reshape(N, fout, H, W)


def _reference(x, w, b, gamma, beta, eps=1e-5, neg_slope=0.2):
    """Pure-JAX reference for the same forward (training-mode BatchNorm)."""
    y = lax.conv_general_dilated(
        x, w, window_strides=(1, 1), padding=((1, 1), (1, 1)),
        dimension_numbers=("NCHW", "OIHW", "NCHW"))
    y = y + b[None, :, None, None]
    mean = jnp.mean(y, axis=(0, 2, 3), keepdims=True)
    var = jnp.mean((y - mean) ** 2, axis=(0, 2, 3), keepdims=True)
    yhat = (y - mean) * lax.rsqrt(var + eps)
    z = gamma[None, :, None, None] * yhat + beta[None, :, None, None]
    return jnp.where(z > 0, z, neg_slope * z)


if __name__ == "__main__":
    key = jax.random.PRNGKey(0)
    kx, kw_, kb, ku, kg, kbt = jax.random.split(key, 6)

    N, fin, fout, H, W = 2, 4, 8, 16, 16
    x = jax.random.normal(kx, (N, fin, H, W), dtype=jnp.float32)

    # Synthetic parameters (Conv2d weight/bias with spectral norm, BN affine).
    w_raw = jax.random.normal(kw_, (fout, fin, 3, 3), dtype=jnp.float32) * 0.1
    b = jax.random.normal(kb, (fout,), dtype=jnp.float32) * 0.1
    w = spectral_normalize(w_raw, ku, n_iter=1)
    gamma = 1.0 + 0.1 * jax.random.normal(kg, (fout,), dtype=jnp.float32)
    beta = 0.1 * jax.random.normal(kbt, (fout,), dtype=jnp.float32)

    out = jax.jit(spade_conv2d)(x, w, b, gamma, beta)
    out = jax.block_until_ready(out)

    ref = _reference(x, w, b, gamma, beta)
    assert out.shape == (N, fout, H, W)
    assert jnp.allclose(out, ref, rtol=1e-4, atol=1e-4), (
        "max abs err = %g" % float(jnp.max(jnp.abs(out - ref))))

    print("KERNEL_OK")
</pallas_src>

<mosaic_0001>
module attributes {stable_mosaic.version = 11 : i64} {
  func.func @conv_stats_kernel(%arg0: i32, %arg1: i32, %arg2: memref<1x18x18x4xf32, #tpu.memory_space<vmem>>, %arg3: memref<3x3x8x4xf32, #tpu.memory_space<vmem>>, %arg4: memref<1x8x256xf32, #tpu.memory_space<vmem>>, %arg5: memref<1x8x1xf32, #tpu.memory_space<vmem>>, %arg6: memref<1x8x1xf32, #tpu.memory_space<vmem>>) attributes {dimension_semantics = [#tpu.dimension_semantics<parallel>, #tpu.dimension_semantics<parallel>], iteration_bounds = array<i64: 2, 1>, scalar_prefetch = 0 : i64, scratch_operands = 0 : i64, tpu.core_type = #tpu.core_type<tc>, window_params = [{transform_indices = @transform_0, window_bounds = array<i64: 1, 18, 18, 4>}, {transform_indices = @transform_1, window_bounds = array<i64: 3, 3, 8, 4>}, {transform_indices = @transform_2, window_bounds = array<i64: 1, 8, 256>}, {transform_indices = @transform_3, window_bounds = array<i64: 1, 8, 1>}, {transform_indices = @transform_4, window_bounds = array<i64: 1, 8, 1>}]} {
    %c0 = arith.constant 0 : index
    %c0_0 = arith.constant 0 : index
    %c0_1 = arith.constant 0 : index
    %c0_2 = arith.constant 0 : index
    %0 = vector.load %arg2[%c0, %c0_0, %c0_1, %c0_2] : memref<1x18x18x4xf32, #tpu.memory_space<vmem>>, vector<1x18x16x4xf32>
    %1 = vector.shape_cast %0 : vector<1x18x16x4xf32> to vector<18x16x4xf32>
    %2 = vector.extract_strided_slice %1 {offsets = [0, 0, 0], sizes = [16, 16, 4], strides = [1, 1, 1]} : vector<18x16x4xf32> to vector<16x16x4xf32>
    %3 = vector.shape_cast %2 : vector<16x16x4xf32> to vector<256x4xf32>
    %c0_3 = arith.constant 0 : index
    %c0_4 = arith.constant 0 : index
    %c0_5 = arith.constant 0 : index
    %c0_6 = arith.constant 0 : index
    %4 = vector.load %arg3[%c0_3, %c0_4, %c0_5, %c0_6] : memref<3x3x8x4xf32, #tpu.memory_space<vmem>>, vector<1x1x8x4xf32>
    %5 = vector.shape_cast %4 : vector<1x1x8x4xf32> to vector<8x4xf32>
    %cst = arith.constant dense<0.000000e+00> : vector<8x256xf32>
    %6 = tpu.matmul %5, %3, %cst {dimension_numbers = #tpu.dot_dimension_numbers<[1], [1], [0], [0], [0, 0, 1, 0], [], []>} : vector<8x4xf32>, vector<256x4xf32>, vector<8x256xf32> -> vector<8x256xf32>
    %7 = vector.extract_strided_slice %1 {offsets = [1, 0, 0], sizes = [16, 16, 4], strides = [1, 1, 1]} : vector<18x16x4xf32> to vector<16x16x4xf32>
    %8 = vector.shape_cast %7 : vector<16x16x4xf32> to vector<256x4xf32>
    %c1 = arith.constant 1 : index
    %c0_7 = arith.constant 0 : index
    %c0_8 = arith.constant 0 : index
    %c0_9 = arith.constant 0 : index
    %9 = vector.load %arg3[%c1, %c0_7, %c0_8, %c0_9] : memref<3x3x8x4xf32, #tpu.memory_space<vmem>>, vector<1x1x8x4xf32>
    %10 = vector.shape_cast %9 : vector<1x1x8x4xf32> to vector<8x4xf32>
    %cst_10 = arith.constant dense<0.000000e+00> : vector<8x256xf32>
    %11 = tpu.matmul %10, %8, %cst_10 {dimension_numbers = #tpu.dot_dimension_numbers<[1], [1], [0], [0], [0, 0, 1, 0], [], []>} : vector<8x4xf32>, vector<256x4xf32>, vector<8x256xf32> -> vector<8x256xf32>
    %12 = arith.addf %6, %11 : vector<8x256xf32>
    %13 = vector.extract_strided_slice %1 {offsets = [2, 0, 0], sizes = [16, 16, 4], strides = [1, 1, 1]} : vector<18x16x4xf32> to vector<16x16x4xf32>
    %14 = vector.shape_cast %13 : vector<16x16x4xf32> to vector<256x4xf32>
    %c2 = arith.constant 2 : index
    %c0_11 = arith.constant 0 : index
    %c0_12 = arith.constant 0 : index
    %c0_13 = arith.constant 0 : index
    %15 = vector.load %arg3[%c2, %c0_11, %c0_12, %c0_13] : memref<3x3x8x4xf32, #tpu.memory_space<vmem>>, vector<1x1x8x4xf32>
    %16 = vector.shape_cast %15 : vector<1x1x8x4xf32> to vector<8x4xf32>
    %cst_14 = arith.constant dense<0.000000e+00> : vector<8x256xf32>
    %17 = tpu.matmul %16, %14, %cst_14 {dimension_numbers = #tpu.dot_dimension_numbers<[1], [1], [0], [0], [0, 0, 1, 0], [], []>} : vector<8x4xf32>, vector<256x4xf32>, vector<8x256xf32> -> vector<8x256xf32>
    %18 = arith.addf %12, %17 : vector<8x256xf32>
    %c0_15 = arith.constant 0 : index
    %c0_16 = arith.constant 0 : index
    %c1_17 = arith.constant 1 : index
    %c0_18 = arith.constant 0 : index
    %19 = vector.load %arg2[%c0_15, %c0_16, %c1_17, %c0_18] : memref<1x18x18x4xf32, #tpu.memory_space<vmem>>, vector<1x18x16x4xf32>
    %20 = vector.shape_cast %19 : vector<1x18x16x4xf32> to vector<18x16x4xf32>
    %21 = vector.extract_strided_slice %20 {offsets = [0, 0, 0], sizes = [16, 16, 4], strides = [1, 1, 1]} : vector<18x16x4xf32> to vector<16x16x4xf32>
    %22 = vector.shape_cast %21 : vector<16x16x4xf32> to vector<256x4xf32>
    %c0_19 = arith.constant 0 : index
    %c1_20 = arith.constant 1 : index
    %c0_21 = arith.constant 0 : index
    %c0_22 = arith.constant 0 : index
    %23 = vector.load %arg3[%c0_19, %c1_20, %c0_21, %c0_22] : memref<3x3x8x4xf32, #tpu.memory_space<vmem>>, vector<1x1x8x4xf32>
    %24 = vector.shape_cast %23 : vector<1x1x8x4xf32> to vector<8x4xf32>
    %cst_23 = arith.constant dense<0.000000e+00> : vector<8x256xf32>
    %25 = tpu.matmul %24, %22, %cst_23 {dimension_numbers = #tpu.dot_dimension_numbers<[1], [1], [0], [0], [0, 0, 1, 0], [], []>} : vector<8x4xf32>, vector<256x4xf32>, vector<8x256xf32> -> vector<8x256xf32>
    %26 = arith.addf %18, %25 : vector<8x256xf32>
    %27 = vector.extract_strided_slice %20 {offsets = [1, 0, 0], sizes = [16, 16, 4], strides = [1, 1, 1]} : vector<18x16x4xf32> to vector<16x16x4xf32>
    %28 = vector.shape_cast %27 : vector<16x16x4xf32> to vector<256x4xf32>
    %c1_24 = arith.constant 1 : index
    %c1_25 = arith.constant 1 : index
    %c0_26 = arith.constant 0 : index
    %c0_27 = arith.constant 0 : index
    %29 = vector.load %arg3[%c1_24, %c1_25, %c0_26, %c0_27] : memref<3x3x8x4xf32, #tpu.memory_space<vmem>>, vector<1x1x8x4xf32>
    %30 = vector.shape_cast %29 : vector<1x1x8x4xf32> to vector<8x4xf32>
    %cst_28 = arith.constant dense<0.000000e+00> : vector<8x256xf32>
    %31 = tpu.matmul %30, %28, %cst_28 {dimension_numbers = #tpu.dot_dimension_numbers<[1], [1], [0], [0], [0, 0, 1, 0], [], []>} : vector<8x4xf32>, vector<256x4xf32>, vector<8x256xf32> -> vector<8x256xf32>
    %32 = arith.addf %26, %31 : vector<8x256xf32>
    %33 = vector.extract_strided_slice %20 {offsets = [2, 0, 0], sizes = [16, 16, 4], strides = [1, 1, 1]} : vector<18x16x4xf32> to vector<16x16x4xf32>
    %34 = vector.shape_cast %33 : vector<16x16x4xf32> to vector<256x4xf32>
    %c2_29 = arith.constant 2 : index
    %c1_30 = arith.constant 1 : index
    %c0_31 = arith.constant 0 : index
    %c0_32 = arith.constant 0 : index
    %35 = vector.load %arg3[%c2_29, %c1_30, %c0_31, %c0_32] : memref<3x3x8x4xf32, #tpu.memory_space<vmem>>, vector<1x1x8x4xf32>
    %36 = vector.shape_cast %35 : vector<1x1x8x4xf32> to vector<8x4xf32>
    %cst_33 = arith.constant dense<0.000000e+00> : vector<8x256xf32>
    %37 = tpu.matmul %36, %34, %cst_33 {dimension_numbers = #tpu.dot_dimension_numbers<[1], [1], [0], [0], [0, 0, 1, 0], [], []>} : vector<8x4xf32>, vector<256x4xf32>, vector<8x256xf32> -> vector<8x256xf32>
    %38 = arith.addf %32, %37 : vector<8x256xf32>
    %c0_34 = arith.constant 0 : index
    %c0_35 = arith.constant 0 : index
    %c2_36 = arith.constant 2 : index
    %c0_37 = arith.constant 0 : index
    %39 = vector.load %arg2[%c0_34, %c0_35, %c2_36, %c0_37] : memref<1x18x18x4xf32, #tpu.memory_space<vmem>>, vector<1x18x16x4xf32>
    %40 = vector.shape_cast %39 : vector<1x18x16x4xf32> to vector<18x16x4xf32>
    %41 = vector.extract_strided_slice %40 {offsets = [0, 0, 0], sizes = [16, 16, 4], strides = [1, 1, 1]} : vector<18x16x4xf32> to vector<16x16x4xf32>
    %42 = vector.shape_cast %41 : vector<16x16x4xf32> to vector<256x4xf32>
    %c0_38 = arith.constant 0 : index
    %c2_39 = arith.constant 2 : index
    %c0_40 = arith.constant 0 : index
    %c0_41 = arith.constant 0 : index
    %43 = vector.load %arg3[%c0_38, %c2_39, %c0_40, %c0_41] : memref<3x3x8x4xf32, #tpu.memory_space<vmem>>, vector<1x1x8x4xf32>
    %44 = vector.shape_cast %43 : vector<1x1x8x4xf32> to vector<8x4xf32>
    %cst_42 = arith.constant dense<0.000000e+00> : vector<8x256xf32>
    %45 = tpu.matmul %44, %42, %cst_42 {dimension_numbers = #tpu.dot_dimension_numbers<[1], [1], [0], [0], [0, 0, 1, 0], [], []>} : vector<8x4xf32>, vector<256x4xf32>, vector<8x256xf32> -> vector<8x256xf32>
    %46 = arith.addf %38, %45 : vector<8x256xf32>
    %47 = vector.extract_strided_slice %40 {offsets = [1, 0, 0], sizes = [16, 16, 4], strides = [1, 1, 1]} : vector<18x16x4xf32> to vector<16x16x4xf32>
    %48 = vector.shape_cast %47 : vector<16x16x4xf32> to vector<256x4xf32>
    %c1_43 = arith.constant 1 : index
    %c2_44 = arith.constant 2 : index
    %c0_45 = arith.constant 0 : index
    %c0_46 = arith.constant 0 : index
    %49 = vector.load %arg3[%c1_43, %c2_44, %c0_45, %c0_46] : memref<3x3x8x4xf32, #tpu.memory_space<vmem>>, vector<1x1x8x4xf32>
    %50 = vector.shape_cast %49 : vector<1x1x8x4xf32> to vector<8x4xf32>
    %cst_47 = arith.constant dense<0.000000e+00> : vector<8x256xf32>
    %51 = tpu.matmul %50, %48, %cst_47 {dimension_numbers = #tpu.dot_dimension_numbers<[1], [1], [0], [0], [0, 0, 1, 0], [], []>} : vector<8x4xf32>, vector<256x4xf32>, vector<8x256xf32> -> vector<8x256xf32>
    %52 = arith.addf %46, %51 : vector<8x256xf32>
    %53 = vector.extract_strided_slice %40 {offsets = [2, 0, 0], sizes = [16, 16, 4], strides = [1, 1, 1]} : vector<18x16x4xf32> to vector<16x16x4xf32>
    %54 = vector.shape_cast %53 : vector<16x16x4xf32> to vector<256x4xf32>
    %c2_48 = arith.constant 2 : index
    %c2_49 = arith.constant 2 : index
    %c0_50 = arith.constant 0 : index
    %c0_51 = arith.constant 0 : index
    %55 = vector.load %arg3[%c2_48, %c2_49, %c0_50, %c0_51] : memref<3x3x8x4xf32, #tpu.memory_space<vmem>>, vector<1x1x8x4xf32>
    %56 = vector.shape_cast %55 : vector<1x1x8x4xf32> to vector<8x4xf32>
    %cst_52 = arith.constant dense<0.000000e+00> : vector<8x256xf32>
    %57 = tpu.matmul %56, %54, %cst_52 {dimension_numbers = #tpu.dot_dimension_numbers<[1], [1], [0], [0], [0, 0, 1, 0], [], []>} : vector<8x4xf32>, vector<256x4xf32>, vector<8x256xf32> -> vector<8x256xf32>
    %58 = arith.addf %52, %57 : vector<8x256xf32>
    %c0_53 = arith.constant 0 : index
    %c0_54 = arith.constant 0 : index
    %c0_55 = arith.constant 0 : index
    %59 = vector.load %arg4[%c0_53, %c0_54, %c0_55] : memref<1x8x256xf32, #tpu.memory_space<vmem>>, vector<1x8x256xf32>
    %60 = vector.shape_cast %59 : vector<1x8x256xf32> to vector<8x256xf32>
    %61 = vector.shape_cast %58 : vector<8x256xf32> to vector<1x8x256xf32>
    tpu.vector_store %arg4[%c0_53, %c0_54, %c0_55], %61 {strides = array<i32>} : memref<1x8x256xf32, #tpu.memory_space<vmem>>, vector<1x8x256xf32>,
    %cst_56 = arith.constant dense<0.000000e+00> : vector<8xf32>
    %62 = vector.multi_reduction <add>, %58, %cst_56 [1] : vector<8x256xf32> to vector<8xf32>
    %63 = vector.shape_cast %62 : vector<8xf32> to vector<8x1xf32>
    %c0_57 = arith.constant 0 : index
    %c0_58 = arith.constant 0 : index
    %c0_59 = arith.constant 0 : index
    %64 = vector.load %arg5[%c0_57, %c0_58, %c0_59] : memref<1x8x1xf32, #tpu.memory_space<vmem>>, vector<1x8x1xf32>
    %65 = vector.shape_cast %64 : vector<1x8x1xf32> to vector<8x1xf32>
    %66 = vector.shape_cast %63 : vector<8x1xf32> to vector<1x8x1xf32>
    tpu.vector_store %arg5[%c0_57, %c0_58, %c0_59], %66 {strides = array<i32>} : memref<1x8x1xf32, #tpu.memory_space<vmem>>, vector<1x8x1xf32>,
    %67 = arith.mulf %58, %58 : vector<8x256xf32>
    %cst_60 = arith.constant dense<0.000000e+00> : vector<8xf32>
    %68 = vector.multi_reduction <add>, %67, %cst_60 [1] : vector<8x256xf32> to vector<8xf32>
    %69 = vector.shape_cast %68 : vector<8xf32> to vector<8x1xf32>
    %c0_61 = arith.constant 0 : index
    %c0_62 = arith.constant 0 : index
    %c0_63 = arith.constant 0 : index
    %70 = vector.load %arg6[%c0_61, %c0_62, %c0_63] : memref<1x8x1xf32, #tpu.memory_space<vmem>>, vector<1x8x1xf32>
    %71 = vector.shape_cast %70 : vector<1x8x1xf32> to vector<8x1xf32>
    %72 = vector.shape_cast %69 : vector<8x1xf32> to vector<1x8x1xf32>
    tpu.vector_store %arg6[%c0_61, %c0_62, %c0_63], %72 {strides = array<i32>} : memref<1x8x1xf32, #tpu.memory_space<vmem>>, vector<1x8x1xf32>,
    return
  }
  func.func @transform_0(%arg0: i32, %arg1: i32) -> (i32, i32, i32, i32) {
    %c0_i32 = arith.constant 0 : i32
    %c0_i32_0 = arith.constant 0 : i32
    %c0_i32_1 = arith.constant 0 : i32
    %c0_i32_2 = arith.constant 0 : i32
    return %arg0, %c0_i32, %c0_i32_0, %c0_i32_1 : i32, i32, i32, i32
  }
  func.func @transform_1(%arg0: i32, %arg1: i32) -> (i32, i32, i32, i32) {
    %c0_i32 = arith.constant 0 : i32
    %c0_i32_0 = arith.constant 0 : i32
    %c0_i32_1 = arith.constant 0 : i32
    %c0_i32_2 = arith.constant 0 : i32
    return %c0_i32, %c0_i32_0, %arg1, %c0_i32_1 : i32, i32, i32, i32
  }
  func.func @transform_2(%arg0: i32, %arg1: i32) -> (i32, i32, i32) {
    %c0_i32 = arith.constant 0 : i32
    %c0_i32_0 = arith.constant 0 : i32
    return %arg0, %arg1, %c0_i32 : i32, i32, i32
  }
  func.func @transform_3(%arg0: i32, %arg1: i32) -> (i32, i32, i32) {
    %c0_i32 = arith.constant 0 : i32
    %c0_i32_0 = arith.constant 0 : i32
    return %arg0, %arg1, %c0_i32 : i32, i32, i32
  }
  func.func @transform_4(%arg0: i32, %arg1: i32) -> (i32, i32, i32) {
    %c0_i32 = arith.constant 0 : i32
    %c0_i32_0 = arith.constant 0 : i32
    return %arg0, %arg1, %c0_i32 : i32, i32, i32
  }
}

module attributes {stable_mosaic.version = 11 : i64} {
  func.func @bn_act_kernel(%arg0: i32, %arg1: memref<16x256xf32, #tpu.memory_space<vmem>>, %arg2: memref<16x1xf32, #tpu.memory_space<vmem>>, %arg3: memref<16x1xf32, #tpu.memory_space<vmem>>, %arg4: memref<16x256xf32, #tpu.memory_space<vmem>>) attributes {dimension_semantics = [#tpu.dimension_semantics<parallel>], iteration_bounds = array<i64: 1>, scalar_prefetch = 0 : i64, scratch_operands = 0 : i64, tpu.core_type = #tpu.core_type<tc>, window_params = [{transform_indices = @transform_0, window_bounds = array<i64: 16, 256>}, {transform_indices = @transform_1, window_bounds = array<i64: 16, 1>}, {transform_indices = @transform_2, window_bounds = array<i64: 16, 1>}, {transform_indices = @transform_3, window_bounds = array<i64: 16, 256>}]} {
    %c0 = arith.constant 0 : index
    %c0_0 = arith.constant 0 : index
    %0 = vector.load %arg1[%c0, %c0_0] : memref<16x256xf32, #tpu.memory_space<vmem>>, vector<16x256xf32>
    %c0_1 = arith.constant 0 : index
    %c0_2 = arith.constant 0 : index
    %1 = vector.load %arg2[%c0_1, %c0_2] : memref<16x1xf32, #tpu.memory_space<vmem>>, vector<16x1xf32>
    %2 = vector.broadcast %1 : vector<16x1xf32> to vector<16x256xf32>
    %3 = arith.mulf %0, %2 : vector<16x256xf32>
    %c0_3 = arith.constant 0 : index
    %c0_4 = arith.constant 0 : index
    %4 = vector.load %arg3[%c0_3, %c0_4] : memref<16x1xf32, #tpu.memory_space<vmem>>, vector<16x1xf32>
    %5 = vector.broadcast %4 : vector<16x1xf32> to vector<16x256xf32>
    %6 = arith.addf %3, %5 : vector<16x256xf32>
    %cst = arith.constant 0.000000e+00 : f32
    %7 = vector.broadcast %cst : f32 to vector<16x256xf32>
    %8 = arith.cmpf ogt, %6, %7 : vector<16x256xf32>
    %cst_5 = arith.constant 2.000000e-01 : f32
    %9 = vector.broadcast %cst_5 : f32 to vector<16x256xf32>
    %10 = arith.mulf %9, %6 : vector<16x256xf32>
    %11 = arith.select %8, %6, %10 : vector<16x256xi1>, vector<16x256xf32>
    %c0_6 = arith.constant 0 : index
    %c0_7 = arith.constant 0 : index
    %12 = vector.load %arg4[%c0_6, %c0_7] : memref<16x256xf32, #tpu.memory_space<vmem>>, vector<16x256xf32>
    tpu.vector_store %arg4[%c0_6, %c0_7], %11 {strides = array<i32>} : memref<16x256xf32, #tpu.memory_space<vmem>>, vector<16x256xf32>,
    return
  }
  func.func @transform_0(%arg0: i32) -> (i32, i32) {
    %c0_i32 = arith.constant 0 : i32
    %c0_i32_0 = arith.constant 0 : i32
    return %arg0, %c0_i32 : i32, i32
  }
  func.func @transform_1(%arg0: i32) -> (i32, i32) {
    %c0_i32 = arith.constant 0 : i32
    %c0_i32_0 = arith.constant 0 : i32
    return %arg0, %c0_i32 : i32, i32
  }
  func.func @transform_2(%arg0: i32) -> (i32, i32) {
    %c0_i32 = arith.constant 0 : i32
    %c0_i32_0 = arith.constant 0 : i32
    return %arg0, %c0_i32 : i32, i32
  }
  func.func @transform_3(%arg0: i32) -> (i32, i32) {
    %c0_i32 = arith.constant 0 : i32
    %c0_i32_0 = arith.constant 0 : i32
    return %arg0, %c0_i32 : i32, i32
  }
}

</mosaic_0001>

<llo_original>
// kernel: spade_conv2d.3
$region0: #{spade_conv2d.3}
  #allocation0 [shape = 'u32[]', space=smem, size = 0x4, offset = 0x4, fixed_abs, tag = 'smem constant byte address 0x4 - core index']
  #allocation1 [shape = 'u32[72,128]{1,0:T(1,128)}', space=vmem, size = 0x9000, scoped, tag = 'internal scratch']
  %s0 = inlined_call_operand.vmem [shape: f32[16,256], index: 0, kind: input, shape index: {}, may-alias: {0,3}]
  %s1 = inlined_call_operand.vmem [shape: f32[16,1], index: 1, kind: input, shape index: {}]
  %s2 = inlined_call_operand.vmem [shape: f32[16,1], index: 2, kind: input, shape index: {}]
  %s3 = inlined_call_operand.vmem [shape: f32[16,256], index: 3, kind: output, shape index: {}, may-alias: {0,3}]
  %s4 = sld [smem:[#allocation0]]
  $region22: #{spade_conv2d.3} parent=0
    _
  %s6 = ssub.s32 1, %s4
  %s7 = scalar_select 0, %s6, %s4
  // Predicated region
  $region2: #{spade_conv2d.3} parent=0 // pred_check
    _
  $region3: #{spade_conv2d.3} parent=0 // pred_check_branch
    %9 = sbr.rel (0) target = $region5
  $region4: #{spade_conv2d.3} parent=0 // pred_region
    _
  $region5: #{spade_conv2d.3} parent=0 // pred_fallthru
    _
  // Predicated region
  $region6: #{spade_conv2d.3} parent=0 // pred_check
    _
  $region7: #{spade_conv2d.3} parent=0 // pred_check_branch
    %11 = sbr.rel (0) target = $region9
  $region8: #{spade_conv2d.3} parent=0 // pred_region
    _
  $region9: #{spade_conv2d.3} parent=0 // pred_fallthru
    _
  // Predicated region
  $region10: #{spade_conv2d.3} parent=0 // pred_check
    _
  $region11: #{spade_conv2d.3} parent=0 // pred_check_branch
    %13 = sbr.rel (0) target = $region13
  $region12: #{spade_conv2d.3} parent=0 // pred_region
    _
  $region13: #{spade_conv2d.3} parent=0 // pred_fallthru
    _
  %v14 = vld [vmem:[%s0] sm:$0xff]
  %v15 = vld [vmem:[%s0 + $0x8] sm:$0xff]
  %v16 = vld [vmem:[%s0 + $0x10] sm:$0xff]
  %v17 = vld [vmem:[%s0 + $0x18] sm:$0xff]
  %v18 = vld [vmem:[%s1] sm:$0xff]
  %v19 = vld [vmem:[%s1 + $0x8] sm:$0xff]
  %21 = vset.pattern.permute.xlu0 0
  %22 = vperm.xlu0 %21, %v18
  %v23 = vpop.permute.xlu0 %22
  %26 = vset.pattern.permute.xlu0 0
  %27 = vperm.xlu0 %26, %v19
  %v28 = vpop.permute.xlu0 %27
  %v30 = vmul.f32 %v14, %v23
  %v31 = vmul.f32 %v15, %v23
  %v32 = vmul.f32 %v16, %v28
  %v33 = vmul.f32 %v17, %v28
  %v34 = vld [vmem:[%s2] sm:$0xff]
  %v35 = vld [vmem:[%s2 + $0x8] sm:$0xff]
  %37 = vset.pattern.permute.xlu0 0
  %38 = vperm.xlu0 %37, %v34
  %v39 = vpop.permute.xlu0 %38
  %42 = vset.pattern.permute.xlu0 0
  %43 = vperm.xlu0 %42, %v35
  %v44 = vpop.permute.xlu0 %43
  %v46 = vadd.f32 %v30, %v39
  %v47 = vadd.f32 %v31, %v39
  %v48 = vadd.f32 %v32, %v44
  %v49 = vadd.f32 %v33, %v44
  %vm50 = vcmp.gt.f32.partialorder %v46, 0.0
  %vm51 = vcmp.gt.f32.partialorder %v47, 0.0
  %vm52 = vcmp.gt.f32.partialorder %v48, 0.0
  %vm53 = vcmp.gt.f32.partialorder %v49, 0.0
  %v54 = vmul.f32 %v46, 0.2
  %v55 = vmul.f32 %v47, 0.2
  %v56 = vmul.f32 %v48, 0.2
  %v57 = vmul.f32 %v49, 0.2
  %v58 = vsel %vm50, %v46, %v54
  %v59 = vsel %vm51, %v47, %v55
  %v60 = vsel %vm52, %v48, %v56
  %v61 = vsel %vm53, %v49, %v57
  %62 = vst [vmem:[%s3] sm:$0xff] %v58
  %63 = vst [vmem:[%s3 + $0x8] sm:$0xff] %v59
  %64 = vst [vmem:[%s3 + $0x10] sm:$0xff] %v60
  %65 = vst [vmem:[%s3 + $0x18] sm:$0xff] %v61
  // Predicated region
  $region14: #{spade_conv2d.3} parent=0 // pred_check
    _
  $region15: #{spade_conv2d.3} parent=0 // pred_check_branch
    %67 = sbr.rel (0) target = $region17
  $region16: #{spade_conv2d.3} parent=0 // pred_region
    _
  $region17: #{spade_conv2d.3} parent=0 // pred_fallthru
    _
  // Predicated region
  $region18: #{spade_conv2d.3} parent=0 // pred_check
    _
  $region19: #{spade_conv2d.3} parent=0 // pred_check_branch
    %69 = sbr.rel (0) target = $region21
  $region20: #{spade_conv2d.3} parent=0 // pred_region
    _
  $region21: #{spade_conv2d.3} parent=0 // pred_fallthru
    _

// kernel: spade_conv2d.2
$region0: #{spade_conv2d.2}
  #allocation0 [shape = 'u32[]', space=smem, size = 0x4, offset = 0x4, fixed_abs, tag = 'smem constant byte address 0x4 - core index']
  #allocation1 [shape = 'u32[72,128]{1,0:T(1,128)}', space=vmem, size = 0x9000, scoped, tag = 'internal scratch']
  %s0 = inlined_call_operand.vmem [shape: f32[2,18,18,4], index: 0, kind: input, shape index: {}]
  %s1 = inlined_call_operand.vmem [shape: f32[3,3,8,4], index: 1, kind: input, shape index: {}]
  %s2 = inlined_call_operand.vmem [shape: f32[2,8,256], index: 2, kind: output, shape index: {0}]
  %s3 = inlined_call_operand.vmem [shape: f32[2,8,1], index: 3, kind: output, shape index: {1}]
  %s4 = inlined_call_operand.vmem [shape: f32[2,8,1], index: 4, kind: output, shape index: {2}]
  %5 = xla_tuple %s2, %s3, %s4
  %s6 = sld [smem:[#allocation0]]
  $region57: #{spade_conv2d.2} parent=0
    _
  %s8 = ssub.s32 1, %s6
  %s9 = scalar_select 0, %s8, %s6
  loop: start=0, step=1, limit=4
  $region2: #{spade_conv2d.2} parent=0 // loop_pre_header
    _
  $region3: #{spade_conv2d.2} parent=0 // loop_header
    %s11 = sphi 0, %s15
    %p12 = scmp.ge.s32.totalorder %s11, 4
    %s18 = sphi 0, %s30
    %s19 = sphi 0, %s26
    %s20 = sphi 0, %s18
    %s21 = sphi 0, %s19
    %s22 = sphi 0, %s20
    %s23 = sphi 0, %s21
    %s33 = sphi 0, %s35
    %s36 = sphi 0, %s33
    %s37 = sphi 0, %s36
    %s53 = sphi 0, %s37
    %s59 = sphi 0, %s61
    %s62 = sphi 0, %s59
    %s63 = sphi 0, %s62
    %s79 = sphi 0, %s63
    %s87 = sphi 0, %s89
    %s90 = sphi 0, %s87
    %s91 = sphi 0, %s90
    %s107 = sphi 0, %s91
    %s115 = sphi 0, %s117
    %s118 = sphi 0, %s115
    %s119 = sphi 0, %s118
    %s135 = sphi 0, %s119
    %s143 = sphi 0, %s145
    %s146 = sphi 0, %s143
    %s147 = sphi 0, %s146
    %s163 = sphi 0, %s147
  $region4: #{spade_conv2d.2} parent=0 // loop_header_branch
    %14 = sbr.rel (%p12) target = $region8
  $region5: #{spade_conv2d.2} parent=0 // loop_body
    %s16 = ssub.s32 %s11, 1
    %s17 = ssub.s32 %s11, 2
    %s24 = sadd.s32 1, %s19
    %p25 = scmp.ge.s32.totalorder %s24, 1
    %s26 = scalar_select %p25, 0, %s24
    %s27 = sadd.s32 1, %s18
    %s28 = scalar_select %p25, %s27, %s18
    %p29 = scmp.ge.s32.totalorder %s28, 2
    %s30 = scalar_select %p29, 0, %s28
    %s31 = ssub.s32 %s18, %s30
    %p32 = scmp.eq.s32.totalorder %s31, 0
    %s34 = sadd.s32 %s33, 1
    %s35 = scalar_select %p32, %s33, %s34
    %p38 = pneg %p32
    %p39 = scmp.eq.s32.totalorder %s11, 1
    %p40 = por %p38, %p39
    %p41 = scmp.ne.s32.totalorder %s33, %s36
    %p42 = scmp.eq.s32.totalorder %s11, 0
    %p43 = por %p41, %p42
    %p44 = scmp.ne.s32.totalorder %s33, %s36
    %p45 = scmp.eq.s32.totalorder %s16, 1
    %p46 = por %p44, %p45
    %p47 = scmp.ne.s32.totalorder %s36, %s37
    %p48 = scmp.eq.s32.totalorder %s16, 0
    %p49 = por %p47, %p48
    %p50 = scmp.ne.s32.totalorder %s36, %s37
    %p51 = scmp.eq.s32.totalorder %s17, 1
    %p52 = por %p50, %p51
    %p54 = scmp.ne.s32.totalorder %s37, %s53
    %p55 = scmp.eq.s32.totalorder %s17, 0
    %p56 = por %p54, %p55
    %s57 = ssub.s32 %s19, %s26
    %p58 = scmp.eq.s32.totalorder %s57, 0
    %s60 = sadd.s32 %s59, 1
    %s61 = scalar_select %p58, %s59, %s60
    %p64 = pneg %p58
    %p65 = scmp.eq.s32.totalorder %s11, 1
    %p66 = por %p64, %p65
    %p67 = scmp.ne.s32.totalorder %s59, %s62
    %p68 = scmp.eq.s32.totalorder %s11, 0
    %p69 = por %p67, %p68
    %p70 = scmp.ne.s32.totalorder %s59, %s62
    %p71 = scmp.eq.s32.totalorder %s16, 1
    %p72 = por %p70, %p71
    %p73 = scmp.ne.s32.totalorder %s62, %s63
    %p74 = scmp.eq.s32.totalorder %s16, 0
    %p75 = por %p73, %p74
    %p76 = scmp.ne.s32.totalorder %s62, %s63
    %p77 = scmp.eq.s32.totalorder %s17, 1
    %p78 = por %p76, %p77
    %p80 = scmp.ne.s32.totalorder %s63, %s79
    %p81 = scmp.eq.s32.totalorder %s17, 0
    %p82 = por %p80, %p81
    %s83 = ssub.s32 %s18, %s30
    %s84 = ssub.s32 %s19, %s26
    %s85 = sor.u32 %s83, %s84
    %p86 = scmp.eq.s32.totalorder %s85, 0
    %s88 = sadd.s32 %s87, 1
    %s89 = scalar_select %p86, %s87, %s88
    %p92 = pneg %p86
    %p93 = scmp.eq.s32.totalorder %s11, 1
    %p94 = por %p92, %p93
    %p95 = scmp.ne.s32.totalorder %s87, %s90
    %p96 = scmp.eq.s32.totalorder %s11, 0
    %p97 = por %p95, %p96
    %p98 = scmp.ne.s32.totalorder %s87, %s90
    %p99 = scmp.eq.s32.totalorder %s16, 1
    %p100 = por %p98, %p99
    %p101 = scmp.ne.s32.totalorder %s90, %s91
    %p102 = scmp.eq.s32.totalorder %s16, 0
    %p103 = por %p101, %p102
    %p104 = scmp.ne.s32.totalorder %s90, %s91
    %p105 = scmp.eq.s32.totalorder %s17, 1
    %p106 = por %p104, %p105
    %p108 = scmp.ne.s32.totalorder %s91, %s107
    %p109 = scmp.eq.s32.totalorder %s17, 0
    %p110 = por %p108, %p109
    %s111 = ssub.s32 %s18, %s30
    %s112 = ssub.s32 %s19, %s26
    %s113 = sor.u32 %s111, %s112
    %p114 = scmp.eq.s32.totalorder %s113, 0
    %s116 = sadd.s32 %s115, 1
    %s117 = scalar_select %p114, %s115, %s116
    %p120 = pneg %p114
    %p121 = scmp.eq.s32.totalorder %s11, 1
    %p122 = por %p120, %p121
    %p123 = scmp.ne.s32.totalorder %s115, %s118
    %p124 = scmp.eq.s32.totalorder %s11, 0
    %p125 = por %p123, %p124
    %p126 = scmp.ne.s32.totalorder %s115, %s118
    %p127 = scmp.eq.s32.totalorder %s16, 1
    %p128 = por %p126, %p127
    %p129 = scmp.ne.s32.totalorder %s118, %s119
    %p130 = scmp.eq.s32.totalorder %s16, 0
    %p131 = por %p129, %p130
    %p132 = scmp.ne.s32.totalorder %s118, %s119
    %p133 = scmp.eq.s32.totalorder %s17, 1
    %p134 = por %p132, %p133
    %p136 = scmp.ne.s32.totalorder %s119, %s135
    %p137 = scmp.eq.s32.totalorder %s17, 0
    %p138 = por %p136, %p137
    %s139 = ssub.s32 %s18, %s30
    %s140 = ssub.s32 %s19, %s26
    %s141 = sor.u32 %s139, %s140
    %p142 = scmp.eq.s32.totalorder %s141, 0
    %s144 = sadd.s32 %s143, 1
    %s145 = scalar_select %p142, %s143, %s144
    %p148 = pneg %p142
    %p149 = scmp.eq.s32.totalorder %s11, 1
    %p150 = por %p148, %p149
    %p151 = scmp.ne.s32.totalorder %s143, %s146
    %p152 = scmp.eq.s32.totalorder %s11, 0
    %p153 = por %p151, %p152
    %p154 = scmp.ne.s32.totalorder %s143, %s146
    %p155 = scmp.eq.s32.totalorder %s16, 1
    %p156 = por %p154, %p155
    %p157 = scmp.ne.s32.totalorder %s146, %s147
    %p158 = scmp.eq.s32.totalorder %s16, 0
    %p159 = por %p157, %p158
    %p160 = scmp.ne.s32.totalorder %s146, %s147
    %p161 = scmp.eq.s32.totalorder %s17, 1
    %p162 = por %p160, %p161
    %p164 = scmp.ne.s32.totalorder %s147, %s163
    %p165 = scmp.eq.s32.totalorder %s17, 0
    %p166 = por %p164, %p165
    %p167 = scmp.le.s32.totalorder 1, %s11
    %p168 = scmp.lt.s32.totalorder %s11, 3
    %p169 = pnand %p167, %p168
    %p170 = pneg %p169
    // Predicated region
    $region9: #{spade_conv2d.2} parent=5 // pred_check
      _
    $region10: #{spade_conv2d.2} parent=5 // pred_check_branch
      %172 = sbr.rel (%p169) target = $region12
    $region11: #{spade_conv2d.2} parent=5 // pred_region
      %s173 = ssub.s32 %s11, 1
      // Predicated region
      $region13: #{spade_conv2d.2} parent=11 // pred_check
        %p174 = pneg %p75
      $region14: #{spade_conv2d.2} parent=11 // pred_check_branch
        %176 = sbr.rel (%p174) target = $region16
      $region15: #{spade_conv2d.2} parent=11 // pred_region
        %p177 = scmp.lt.s32.totalorder %s21, 0
        %s178 = scalar_select %p177, %s21, 0
        %s179 = smul.addr %s178, 8
        %s180 = scalar_lea.vmem %s1, %s179
      $region16: #{spade_conv2d.2} parent=11 // pred_fallthru
        _
    $region12: #{spade_conv2d.2} parent=5 // pred_fallthru
      _
    %p181 = scmp.lt.s32.totalorder %s11, 2
    // Predicated region
    $region17: #{spade_conv2d.2} parent=5 // pred_check
      %p182 = pneg %p181
    $region18: #{spade_conv2d.2} parent=5 // pred_check_branch
      %184 = sbr.rel (%p182) target = $region20
    $region19: #{spade_conv2d.2} parent=5 // pred_region
      // Predicated region
      $region21: #{spade_conv2d.2} parent=19 // pred_check
        %p185 = pneg %p43
      $region22: #{spade_conv2d.2} parent=19 // pred_check_branch
        %187 = sbr.rel (%p185) target = $region24
      $region23: #{spade_conv2d.2} parent=19 // pred_region
        %p188 = scmp.lt.s32.totalorder %s18, 1
        %s189 = scalar_select %p188, %s18, 1
        %s190 = smul.addr %s189, 54
        %s191 = smul.addr %s190, 8
        %s192 = scalar_lea.vmem %s0, %s191
      $region24: #{spade_conv2d.2} parent=19 // pred_fallthru
        _
    $region20: #{spade_conv2d.2} parent=5 // pred_fallthru
      _
    %p193 = scmp.le.s32.totalorder 1, %s11
    %p194 = scmp.lt.s32.totalorder %s11, 3
    %p195 = pnand %p193, %p194
    %p196 = pneg %p195
    // Predicated region
    $region25: #{spade_conv2d.2} parent=5 // pred_check
      _
    $region26: #{spade_conv2d.2} parent=5 // pred_check_branch
      %198 = sbr.rel (%p195) target = $region28
    $region27: #{spade_conv2d.2} parent=5 // pred_region
      %s199 = ssub.s32 %s11, 1
      %p200 = scmp.lt.s32.totalorder %s20, 1
      %s201 = scalar_select %p200, %s20, 1
      %s202 = smul.addr %s201, 54
      %s203 = smul.addr %s202, 8
      %s204 = scalar_lea.vmem %s0, %s203
      %p205 = pneg %p49
      %p206 = pneg %p46
      %p207 = scmp.lt.s32.totalorder %s21, 0
      %s208 = scalar_select %p207, %s21, 0
      %s209 = smul.addr %s208, 8
      %s210 = scalar_lea.vmem %s1, %s209
      %p211 = pneg %p75
      %p212 = pneg %p72
      %p213 = pneg %p103
      %p214 = pneg %p100
      %p215 = scmp.lt.s32.totalorder %s20, 1
      %s216 = scalar_select %p215, %s20, 1
      %p217 = scmp.lt.s32.totalorder %s21, 0
      %s218 = scalar_select %p217, %s21, 0
      %s219 = smul.addr %s218, 2
      %s220 = smul.addr %s216, 2
      %s221 = sadd.s32 %s219, %s220
      %s222 = smul.addr %s221, 8
      %s223 = scalar_lea.vmem %s2, %s222
      %p224 = pneg %p131
      %p225 = pneg %p128
      %p226 = scmp.lt.s32.totalorder %s20, 1
      %s227 = scalar_select %p226, %s20, 1
      %p228 = scmp.lt.s32.totalorder %s21, 0
      %s229 = scalar_select %p228, %s21, 0
      %s230 = sadd.s32 %s229, %s227
      %s231 = smul.addr %s230, 8
      %s232 = scalar_lea.vmem %s3, %s231
      %p233 = pneg %p159
      %p234 = pneg %p156
      %p235 = scmp.lt.s32.totalorder %s20, 1
      %s236 = scalar_select %p235, %s20, 1
      %p237 = scmp.lt.s32.totalorder %s21, 0
      %s238 = scalar_select %p237, %s21, 0
      %s239 = sadd.s32 %s238, %s236
      %s240 = smul.addr %s239, 8
      %s241 = scalar_lea.vmem %s4, %s240
      %p242 = scmp.lt.s32.totalorder %s20, 1
      %s243 = scalar_select %p242, %s20, 1
      %s244 = smul.addr %s243, 54
      %s245 = smul.addr %s244, 8
      %s246 = scalar_lea.vmem %s0, %s245
      %p247 = scmp.lt.s32.totalorder %s21, 0
      %s248 = scalar_select %p247, %s21, 0
      %s249 = smul.addr %s248, 8
      %s250 = scalar_lea.vmem %s1, %s249
      %p251 = scmp.lt.s32.totalorder %s20, 1
      %s252 = scalar_select %p251, %s20, 1
      %p253 = scmp.lt.s32.totalorder %s21, 0
      %s254 = scalar_select %p253, %s21, 0
      %s255 = smul.addr %s254, 2
      %s256 = smul.addr %s252, 2
      %s257 = sadd.s32 %s255, %s256
      %s258 = smul.addr %s257, 8
      %s259 = scalar_lea.vmem %s2, %s258
      %p260 = scmp.lt.s32.totalorder %s20, 1
      %s261 = scalar_select %p260, %s20, 1
      %p262 = scmp.lt.s32.totalorder %s21, 0
      %s263 = scalar_select %p262, %s21, 0
      %s264 = sadd.s32 %s263, %s261
      %s265 = smul.addr %s264, 8
      %s266 = scalar_lea.vmem %s3, %s265
      %p267 = scmp.lt.s32.totalorder %s20, 1
      %s268 = scalar_select %p267, %s20, 1
      %p269 = scmp.lt.s32.totalorder %s21, 0
      %s270 = scalar_select %p269, %s21, 0
      %s271 = sadd.s32 %s270, %s268
      %s272 = smul.addr %s271, 8
      %s273 = scalar_lea.vmem %s4, %s272
      %v274 = vld [vmem:[%s246] sm:$0xff]
      %v275 = vld [vmem:[%s246 + $0x8] sm:$0xff]
      %v276 = vld [vmem:[%s246 + $0x18] sm:$0xff]
      %v277 = vld [vmem:[%s246 + $0x20] sm:$0xff]
      %v278 = vld [vmem:[%s246 + $0x30] sm:$0xff]
      %v279 = vld [vmem:[%s246 + $0x38] sm:$0xff]
      %v280 = vld [vmem:[%s246 + $0x48] sm:$0xff]
      %v281 = vld [vmem:[%s246 + $0x50] sm:$0xff]
      %v282 = vld [vmem:[%s246 + $0x60] sm:$0xff]
      %v283 = vld [vmem:[%s246 + $0x68] sm:$0xff]
      %v284 = vld [vmem:[%s246 + $0x78] sm:$0xff]
      %v285 = vld [vmem:[%s246 + $0x80] sm:$0xff]
      %v286 = vld [vmem:[%s246 + $0x90] sm:$0xff]
      %v287 = vld [vmem:[%s246 + $0x98] sm:$0xff]
      %v288 = vld [vmem:[%s246 + $0xa8] sm:$0xff]
      %v289 = vld [vmem:[%s246 + $0xb0] sm:$0xff]
      %v290 = vld [vmem:[%s246 + $0xc0] sm:$0xff]
      %v291 = vld [vmem:[%s246 + $0xc8] sm:$0xff]
      %v292 = vld [vmem:[%s246 + $0xd8] sm:$0xff]
      %v293 = vld [vmem:[%s246 + $0xe0] sm:$0xff]
      %v294 = vld [vmem:[%s246 + $0xf0] sm:$0xff]
      %v295 = vld [vmem:[%s246 + $0xf8] sm:$0xff]
      %v296 = vld [vmem:[%s246 + $0x108] sm:$0xff]
      %v297 = vld [vmem:[%s246 + $0x110] sm:$0xff]
      %v298 = vld [vmem:[%s246 + $0x120] sm:$0xff]
      %v299 = vld [vmem:[%s246 + $0x128] sm:$0xff]
      %v300 = vld [vmem:[%s246 + $0x138] sm:$0xff]
      %v301 = vld [vmem:[%s246 + $0x140] sm:$0xff]
      %v302 = vld [vmem:[%s246 + $0x150] sm:$0xff]
      %v303 = vld [vmem:[%s246 + $0x158] sm:$0xff]
      %v304 = vld [vmem:[%s246 + $0x168] sm:$0xff]
      %v305 = vld [vmem:[%s246 + $0x170] sm:$0xff]
      %v306 = vld [vmem:[%s246 + $0x180] sm:$0xff]
      %v307 = vld [vmem:[%s246 + $0x188] sm:$0xff]
      %v308 = vld [vmem:[%s246 + $0x198] sm:$0xff]
      %v309 = vld [vmem:[%s246 + $0x1a0] sm:$0xff]
      %v310 = vld [vmem:[%s250] sm:$0xff]
      %s311 = scalar_lea.vmem %s250, 24
      %v312 = vld [vmem:[%s311] sm:$0xff]
      %vm313 = vcmask 31744
      %v315 = vsel %vm313, %v312, 0
      %v318 = vsel %vm313, %v276, 0
      %v321 = vsel %vm313, %v277, 0
      %v324 = vsel %vm313, %v278, 0
      %v327 = vsel %vm313, %v279, 0
      %v330 = vsel %vm313, %v280, 0
      %v333 = vsel %vm313, %v281, 0
      %v336 = vsel %vm313, %v282, 0
      %v339 = vsel %vm313, %v283, 0
      %v342 = vsel %vm313, %v284, 0
      %v345 = vsel %vm313, %v285, 0
      %v348 = vsel %vm313, %v286, 0
      %v351 = vsel %vm313, %v287, 0
      %v354 = vsel %vm313, %v288, 0
      %v357 = vsel %vm313, %v289, 0
      %v360 = vsel %vm313, %v290, 0
      %v363 = vsel %vm313, %v291, 0
      %v366 = vsel %vm313, %v292, 0
      %v369 = vsel %vm313, %v293, 0
      %v372 = vsel %vm313, %v294, 0
      %v375 = vsel %vm313, %v295, 0
      %v378 = vsel %vm313, %v296, 0
      %v381 = vsel %vm313, %v297, 0
      %v384 = vsel %vm313, %v298, 0
      %v387 = vsel %vm313, %v299, 0
      %v390 = vsel %vm313, %v300, 0
      %v393 = vsel %vm313, %v301, 0
      %v396 = vsel %vm313, %v302, 0
      %v399 = vsel %vm313, %v303, 0
      %v402 = vsel %vm313, %v304, 0
      %v405 = vsel %vm313, %v305, 0
      %v408 = vsel %vm313, %v306, 0
      %v411 = vsel %vm313, %v307, 0
      %413 = vmatpush.xpose.msra.mxu0 %v363
      %414 = vmatpush.xpose.msra.mxu0 %v360
      %415 = vmatpush.xpose.msra.mxu0 %v357
      %416 = vmatpush.xpose.msra.mxu0 %v354
      %417 = vmatpush.xpose.msra.mxu0 %v351
      %418 = vmatpush.xpose.msra.mxu0 %v348
      %419 = vmatpush.xpose.msra.mxu0 %v345
      %420 = vmatpush.xpose.msra.mxu0 %v342
      %421 = vmatpush.xpose.msra.mxu0 %v339
      %422 = vmatpush.xpose.msra.mxu0 %v336
      %423 = vmatpush.xpose.msra.mxu0 %v333
      %424 = vmatpush.xpose.msra.mxu0 %v330
      %425 = vmatpush.xpose.msra.mxu0 %v327
      %426 = vmatpush.xpose.msra.mxu0 %v324
      %427 = vmatpush.xpose.msra.mxu0 %v321
      %428 = vmatpush.xpose.msra.mxu0 %v318
      %429 = vmatmul.f32.gmra.mxu0 %v315
      %v430 = vpop.f32.mrf.mxu0
      %v431 = vadd.f32 0.0, %v430
      %432 = vdwg.mxu0
      %433 = vmatpush.xpose.msra.mxu0 %v411
      %434 = vmatpush.xpose.msra.mxu0 %v408
      %435 = vmatpush.xpose.msra.mxu0 %v405
      %436 = vmatpush.xpose.msra.mxu0 %v402
      %437 = vmatpush.xpose.msra.mxu0 %v399
      %438 = vmatpush.xpose.msra.mxu0 %v396
      %439 = vmatpush.xpose.msra.mxu0 %v393
      %440 = vmatpush.xpose.msra.mxu0 %v390
      %441 = vmatpush.xpose.msra.mxu0 %v387
      %442 = vmatpush.xpose.msra.mxu0 %v384
      %443 = vmatpush.xpose.msra.mxu0 %v381
      %444 = vmatpush.xpose.msra.mxu0 %v378
      %445 = vmatpush.xpose.msra.mxu0 %v375
      %446 = vmatpush.xpose.msra.mxu0 %v372
      %447 = vmatpush.xpose.msra.mxu0 %v369
      %448 = vmatpush.xpose.msra.mxu0 %v366
      %449 = vmatmul.f32.gmra.mxu0 %v315
      %v450 = vpop.f32.mrf.mxu0
      %v451 = vadd.f32 0.0, %v450
      %452 = vdwg.mxu0
      %v454 = vsel %vm313, %v310, 0
      %v457 = vsel %vm313, %v274, 0
      %v460 = vsel %vm313, %v275, 0
      %462 = vmatpush.xpose.msra.mxu0 %v357
      %463 = vmatpush.xpose.msra.mxu0 %v354
      %464 = vmatpush.xpose.msra.mxu0 %v351
      %465 = vmatpush.xpose.msra.mxu0 %v348
      %466 = vmatpush.xpose.msra.mxu0 %v345
      %467 = vmatpush.xpose.msra.mxu0 %v342
      %468 = vmatpush.xpose.msra.mxu0 %v339
      %469 = vmatpush.xpose.msra.mxu0 %v336
      %470 = vmatpush.xpose.msra.mxu0 %v333
      %471 = vmatpush.xpose.msra.mxu0 %v330
      %472 = vmatpush.xpose.msra.mxu0 %v327
      %473 = vmatpush.xpose.msra.mxu0 %v324
      %474 = vmatpush.xpose.msra.mxu0 %v321
      %475 = vmatpush.xpose.msra.mxu0 %v318
      %476 = vmatpush.xpose.msra.mxu0 %v460
      %477 = vmatpush.xpose.msra.mxu0 %v457
      %478 = vmatmul.f32.gmra.mxu0 %v454
      %v479 = vpop.f32.mrf.mxu0
      %v480 = vadd.f32 %v431, %v479
      %481 = vdwg.mxu0
      %482 = vmatpush.xpose.msra.mxu0 %v405
      %483 = vmatpush.xpose.msra.mxu0 %v402
      %484 = vmatpush.xpose.msra.mxu0 %v399
      %485 = vmatpush.xpose.msra.mxu0 %v396
      %486 = vmatpush.xpose.msra.mxu0 %v393
      %487 = vmatpush.xpose.msra.mxu0 %v390
      %488 = vmatpush.xpose.msra.mxu0 %v387
      %489 = vmatpush.xpose.msra.mxu0 %v384
      %490 = vmatpush.xpose.msra.mxu0 %v381
      %491 = vmatpush.xpose.msra.mxu0 %v378
      %492 = vmatpush.xpose.msra.mxu0 %v375
      %493 = vmatpush.xpose.msra.mxu0 %v372
      %494 = vmatpush.xpose.msra.mxu0 %v369
      %495 = vmatpush.xpose.msra.mxu0 %v366
      %496 = vmatpush.xpose.msra.mxu0 %v363
      %497 = vmatpush.xpose.msra.mxu0 %v360
      %498 = vmatmul.f32.gmra.mxu0 %v454
      %v499 = vpop.f32.mrf.mxu0
      %v500 = vadd.f32 %v451, %v499
      %501 = vdwg.mxu0
      %s502 = scalar_lea.vmem %s250, 48
      %v503 = vld [vmem:[%s502] sm:$0xff]
      %v505 = vsel %vm313, %v503, 0
      %v508 = vsel %vm313, %v308, 0
      %v511 = vsel %vm313, %v309, 0
      %513 = vmatpush.xpose.msra.mxu0 %v369
      %514 = vmatpush.xpose.msra.mxu0 %v366
      %515 = vmatpush.xpose.msra.mxu0 %v363
      %516 = vmatpush.xpose.msra.mxu0 %v360
      %517 = vmatpush.xpose.msra.mxu0 %v357
      %518 = vmatpush.xpose.msra.mxu0 %v354
      %519 = vmatpush.xpose.msra.mxu0 %v351
      %520 = vmatpush.xpose.msra.mxu0 %v348
      %521 = vmatpush.xpose.msra.mxu0 %v345
      %522 = vmatpush.xpose.msra.mxu0 %v342
      %523 = vmatpush.xpose.msra.mxu0 %v339
      %524 = vmatpush.xpose.msra.mxu0 %v336
      %525 = vmatpush.xpose.msra.mxu0 %v333
      %526 = vmatpush.xpose.msra.mxu0 %v330
      %527 = vmatpush.xpose.msra.mxu0 %v327
      %528 = vmatpush.xpose.msra.mxu0 %v324
      %529 = vmatmul.f32.gmra.mxu0 %v505
      %v530 = vpop.f32.mrf.mxu0
      %v531 = vadd.f32 0.0, %v530
      %532 = vdwg.mxu0
      %533 = vmatpush.xpose.msra.mxu0 %v511
      %534 = vmatpush.xpose.msra.mxu0 %v508
      %535 = vmatpush.xpose.msra.mxu0 %v411
      %536 = vmatpush.xpose.msra.mxu0 %v408
      %537 = vmatpush.xpose.msra.mxu0 %v405
      %538 = vmatpush.xpose.msra.mxu0 %v402
      %539 = vmatpush.xpose.msra.mxu0 %v399
      %540 = vmatpush.xpose.msra.mxu0 %v396
      %541 = vmatpush.xpose.msra.mxu0 %v393
      %542 = vmatpush.xpose.msra.mxu0 %v390
      %543 = vmatpush.xpose.msra.mxu0 %v387
      %544 = vmatpush.xpose.msra.mxu0 %v384
      %545 = vmatpush.xpose.msra.mxu0 %v381
      %546 = vmatpush.xpose.msra.mxu0 %v378
      %547 = vmatpush.xpose.msra.mxu0 %v375
      %548 = vmatpush.xpose.msra.mxu0 %v372
      %549 = vmatmul.f32.gmra.mxu0 %v505
      %v550 = vpop.f32.mrf.mxu0
      %v551 = vadd.f32 0.0, %v550
      %552 = vdwg.mxu0
      %v553 = vadd.f32 %v480, %v531
      %v554 = vadd.f32 %v500, %v551
      %v555 = vld [vmem:[%s246 + $0x1] sm:$0xff]
      %v556 = vld [vmem:[%s246 + $0x9] sm:$0xff]
      %v557 = vld [vmem:[%s246 + $0x19] sm:$0xff]
      %v558 = vld [vmem:[%s246 + $0x21] sm:$0xff]
      %v559 = vld [vmem:[%s246 + $0x31] sm:$0xff]
      %v560 = vld [vmem:[%s246 + $0x39] sm:$0xff]
      %v561 = vld [vmem:[%s246 + $0x49] sm:$0xff]
      %v562 = vld [vmem:[%s246 + $0x51] sm:$0xff]
      %v563 = vld [vmem:[%s246 + $0x61] sm:$0xff]
      %v564 = vld [vmem:[%s246 + $0x69] sm:$0xff]
      %v565 = vld [vmem:[%s246 + $0x79] sm:$0xff]
      %v566 = vld [vmem:[%s246 + $0x81] sm:$0xff]
      %v567 = vld [vmem:[%s246 + $0x91] sm:$0xff]
      %v568 = vld [vmem:[%s246 + $0x99] sm:$0xff]
      %v569 = vld [vmem:[%s246 + $0xa9] sm:$0xff]
      %v570 = vld [vmem:[%s246 + $0xb1] sm:$0xff]
      %v571 = vld [vmem:[%s246 + $0xc1] sm:$0xff]
      %v572 = vld [vmem:[%s246 + $0xc9] sm:$0xff]
      %v573 = vld [vmem:[%s246 + $0xd9] sm:$0xff]
      %v574 = vld [vmem:[%s246 + $0xe1] sm:$0xff]
      %v575 = vld [vmem:[%s246 + $0xf1] sm:$0xff]
      %v576 = vld [vmem:[%s246 + $0xf9] sm:$0xff]
      %v577 = vld [vmem:[%s246 + $0x109] sm:$0xff]
      %v578 = vld [vmem:[%s246 + $0x111] sm:$0xff]
      %v579 = vld [vmem:[%s246 + $0x121] sm:$0xff]
      %v580 = vld [vmem:[%s246 + $0x129] sm:$0xff]
      %v581 = vld [vmem:[%s246 + $0x139] sm:$0xff]
      %v582 = vld [vmem:[%s246 + $0x141] sm:$0xff]
      %v583 = vld [vmem:[%s246 + $0x151] sm:$0xff]
      %v584 = vld [vmem:[%s246 + $0x159] sm:$0xff]
      %v585 = vld [vmem:[%s246 + $0x169] sm:$0xff]
      %v586 = vld [vmem:[%s246 + $0x171] sm:$0xff]
      %v587 = vld [vmem:[%s246 + $0x181] sm:$0xff]
      %v588 = vld [vmem:[%s246 + $0x189] sm:$0xff]
      %v589 = vld [vmem:[%s246 + $0x199] sm:$0xff]
      %v590 = vld [vmem:[%s246 + $0x1a1] sm:$0xff]
      %s591 = scalar_lea.vmem %s250, 8
      %v592 = vld [vmem:[%s591] sm:$0xff]
      %v594 = vsel %vm313, %v592, 0
      %v597 = vsel %vm313, %v555, 0
      %v600 = vsel %vm313, %v556, 0
      %v603 = vsel %vm313, %v557, 0
      %v606 = vsel %vm313, %v558, 0
      %v609 = vsel %vm313, %v559, 0
      %v612 = vsel %vm313, %v560, 0
      %v615 = vsel %vm313, %v561, 0
      %v618 = vsel %vm313, %v562, 0
      %v621 = vsel %vm313, %v563, 0
      %v624 = vsel %vm313, %v564, 0
      %v627 = vsel %vm313, %v565, 0
      %v630 = vsel %vm313, %v566, 0
      %v633 = vsel %vm313, %v567, 0
      %v636 = vsel %vm313, %v568, 0
      %v639 = vsel %vm313, %v569, 0
      %v642 = vsel %vm313, %v570, 0
      %v645 = vsel %vm313, %v571, 0
      %v648 = vsel %vm313, %v572, 0
      %v651 = vsel %vm313, %v573, 0
      %v654 = vsel %vm313, %v574, 0
      %v657 = vsel %vm313, %v575, 0
      %v660 = vsel %vm313, %v576, 0
      %v663 = vsel %vm313, %v577, 0
      %v666 = vsel %vm313, %v578, 0
      %v669 = vsel %vm313, %v579, 0
      %v672 = vsel %vm313, %v580, 0
      %v675 = vsel %vm313, %v581, 0
      %v678 = vsel %vm313, %v582, 0
      %v681 = vsel %vm313, %v583, 0
      %v684 = vsel %vm313, %v584, 0
      %v687 = vsel %vm313, %v585, 0
      %v690 = vsel %vm313, %v586, 0
      %692 = vmatpush.xpose.msra.mxu0 %v642
      %693 = vmatpush.xpose.msra.mxu0 %v639
      %694 = vmatpush.xpose.msra.mxu0 %v636
      %695 = vmatpush.xpose.msra.mxu0 %v633
      %696 = vmatpush.xpose.msra.mxu0 %v630
      %697 = vmatpush.xpose.msra.mxu0 %v627
      %698 = vmatpush.xpose.msra.mxu0 %v624
      %699 = vmatpush.xpose.msra.mxu0 %v621
      %700 = vmatpush.xpose.msra.mxu0 %v618
      %701 = vmatpush.xpose.msra.mxu0 %v615
      %702 = vmatpush.xpose.msra.mxu0 %v612
      %703 = vmatpush.xpose.msra.mxu0 %v609
      %704 = vmatpush.xpose.msra.mxu0 %v606
      %705 = vmatpush.xpose.msra.mxu0 %v603
      %706 = vmatpush.xpose.msra.mxu0 %v600
      %707 = vmatpush.xpose.msra.mxu0 %v597
      %708 = vmatmul.f32.gmra.mxu0 %v594
      %v709 = vpop.f32.mrf.mxu0
      %v710 = vadd.f32 0.0, %v709
      %711 = vdwg.mxu0
      %712 = vmatpush.xpose.msra.mxu0 %v690
      %713 = vmatpush.xpose.msra.mxu0 %v687
      %714 = vmatpush.xpose.msra.mxu0 %v684
      %715 = vmatpush.xpose.msra.mxu0 %v681
      %716 = vmatpush.xpose.msra.mxu0 %v678
      %717 = vmatpush.xpose.msra.mxu0 %v675
      %718 = vmatpush.xpose.msra.mxu0 %v672
      %719 = vmatpush.xpose.msra.mxu0 %v669
      %720 = vmatpush.xpose.msra.mxu0 %v666
      %721 = vmatpush.xpose.msra.mxu0 %v663
      %722 = vmatpush.xpose.msra.mxu0 %v660
      %723 = vmatpush.xpose.msra.mxu0 %v657
      %724 = vmatpush.xpose.msra.mxu0 %v654
      %725 = vmatpush.xpose.msra.mxu0 %v651
      %726 = vmatpush.xpose.msra.mxu0 %v648
      %727 = vmatpush.xpose.msra.mxu0 %v645
      %728 = vmatmul.f32.gmra.mxu0 %v594
      %v729 = vpop.f32.mrf.mxu0
      %v730 = vadd.f32 0.0, %v729
      %731 = vdwg.mxu0
      %v732 = vadd.f32 %v553, %v710
      %v733 = vadd.f32 %v554, %v730
      %s734 = scalar_lea.vmem %s250, 32
      %v735 = vld [vmem:[%s734] sm:$0xff]
      %v737 = vsel %vm313, %v735, 0
      %v740 = vsel %vm313, %v587, 0
      %v743 = vsel %vm313, %v588, 0
      %745 = vmatpush.xpose.msra.mxu0 %v648
      %746 = vmatpush.xpose.msra.mxu0 %v645
      %747 = vmatpush.xpose.msra.mxu0 %v642
      %748 = vmatpush.xpose.msra.mxu0 %v639
      %749 = vmatpush.xpose.msra.mxu0 %v636
      %750 = vmatpush.xpose.msra.mxu0 %v633
      %751 = vmatpush.xpose.msra.mxu0 %v630
      %752 = vmatpush.xpose.msra.mxu0 %v627
      %753 = vmatpush.xpose.msra.mxu0 %v624
      %754 = vmatpush.xpose.msra.mxu0 %v621
      %755 = vmatpush.xpose.msra.mxu0 %v618
      %756 = vmatpush.xpose.msra.mxu0 %v615
      %757 = vmatpush.xpose.msra.mxu0 %v612
      %758 = vmatpush.xpose.msra.mxu0 %v609
      %759 = vmatpush.xpose.msra.mxu0 %v606
      %760 = vmatpush.xpose.msra.mxu0 %v603
      %761 = vmatmul.f32.gmra.mxu0 %v737
      %v762 = vpop.f32.mrf.mxu0
      %v763 = vadd.f32 0.0, %v762
      %764 = vdwg.mxu0
      %765 = vmatpush.xpose.msra.mxu0 %v743
      %766 = vmatpush.xpose.msra.mxu0 %v740
      %767 = vmatpush.xpose.msra.mxu0 %v690
      %768 = vmatpush.xpose.msra.mxu0 %v687
      %769 = vmatpush.xpose.msra.mxu0 %v684
      %770 = vmatpush.xpose.msra.mxu0 %v681
      %771 = vmatpush.xpose.msra.mxu0 %v678
      %772 = vmatpush.xpose.msra.mxu0 %v675
      %773 = vmatpush.xpose.msra.mxu0 %v672
      %774 = vmatpush.xpose.msra.mxu0 %v669
      %775 = vmatpush.xpose.msra.mxu0 %v666
      %776 = vmatpush.xpose.msra.mxu0 %v663
      %777 = vmatpush.xpose.msra.mxu0 %v660
      %778 = vmatpush.xpose.msra.mxu0 %v657
      %779 = vmatpush.xpose.msra.mxu0 %v654
      %780 = vmatpush.xpose.msra.mxu0 %v651
      %781 = vmatmul.f32.gmra.mxu0 %v737
      %v782 = vpop.f32.mrf.mxu0
      %v783 = vadd.f32 0.0, %v782
      %784 = vdwg.mxu0
      %v785 = vadd.f32 %v732, %v763
      %v786 = vadd.f32 %v733, %v783
      %s787 = scalar_lea.vmem %s250, 56
      %v788 = vld [vmem:[%s787] sm:$0xff]
      %v790 = vsel %vm313, %v788, 0
      %v793 = vsel %vm313, %v589, 0
      %v796 = vsel %vm313, %v590, 0
      %798 = vmatpush.xpose.msra.mxu0 %v654
      %799 = vmatpush.xpose.msra.mxu0 %v651
      %800 = vmatpush.xpose.msra.mxu0 %v648
      %801 = vmatpush.xpose.msra.mxu0 %v645
      %802 = vmatpush.xpose.msra.mxu0 %v642
      %803 = vmatpush.xpose.msra.mxu0 %v639
      %804 = vmatpush.xpose.msra.mxu0 %v636
      %805 = vmatpush.xpose.msra.mxu0 %v633
      %806 = vmatpush.xpose.msra.mxu0 %v630
      %807 = vmatpush.xpose.msra.mxu0 %v627
      %808 = vmatpush.xpose.msra.mxu0 %v624
      %809 = vmatpush.xpose.msra.mxu0 %v621
      %810 = vmatpush.xpose.msra.mxu0 %v618
      %811 = vmatpush.xpose.msra.mxu0 %v615
      %812 = vmatpush.xpose.msra.mxu0 %v612
      %813 = vmatpush.xpose.msra.mxu0 %v609
      %814 = vmatmul.f32.gmra.mxu0 %v790
      %v815 = vpop.f32.mrf.mxu0
      %v816 = vadd.f32 0.0, %v815
      %817 = vdwg.mxu0
      %818 = vmatpush.xpose.msra.mxu0 %v796
      %819 = vmatpush.xpose.msra.mxu0 %v793
      %820 = vmatpush.xpose.msra.mxu0 %v743
      %821 = vmatpush.xpose.msra.mxu0 %v740
      %822 = vmatpush.xpose.msra.mxu0 %v690
      %823 = vmatpush.xpose.msra.mxu0 %v687
      %824 = vmatpush.xpose.msra.mxu0 %v684
      %825 = vmatpush.xpose.msra.mxu0 %v681
      %826 = vmatpush.xpose.msra.mxu0 %v678
      %827 = vmatpush.xpose.msra.mxu0 %v675
      %828 = vmatpush.xpose.msra.mxu0 %v672
      %829 = vmatpush.xpose.msra.mxu0 %v669
      %830 = vmatpush.xpose.msra.mxu0 %v666
      %831 = vmatpush.xpose.msra.mxu0 %v663
      %832 = vmatpush.xpose.msra.mxu0 %v660
      %833 = vmatpush.xpose.msra.mxu0 %v657
      %834 = vmatmul.f32.gmra.mxu0 %v790
      %v835 = vpop.f32.mrf.mxu0
      %v836 = vadd.f32 0.0, %v835
      %837 = vdwg.mxu0
      %v838 = vadd.f32 %v785, %v816
      %v839 = vadd.f32 %v786, %v836
      %v840 = vld [vmem:[%s246 + $0x2] sm:$0xff]
      %v841 = vld [vmem:[%s246 + $0xa] sm:$0xff]
      %v842 = vld [vmem:[%s246 + $0x1a] sm:$0xff]
      %v843 = vld [vmem:[%s246 + $0x22] sm:$0xff]
      %v844 = vld [vmem:[%s246 + $0x32] sm:$0xff]
      %v845 = vld [vmem:[%s246 + $0x3a] sm:$0xff]
      %v846 = vld [vmem:[%s246 + $0x4a] sm:$0xff]
      %v847 = vld [vmem:[%s246 + $0x52] sm:$0xff]
      %v848 = vld [vmem:[%s246 + $0x62] sm:$0xff]
      %v849 = vld [vmem:[%s246 + $0x6a] sm:$0xff]
      %v850 = vld [vmem:[%s246 + $0x7a] sm:$0xff]
      %v851 = vld [vmem:[%s246 + $0x82] sm:$0xff]
      %v852 = vld [vmem:[%s246 + $0x92] sm:$0xff]
      %v853 = vld [vmem:[%s246 + $0x9a] sm:$0xff]
      %v854 = vld [vmem:[%s246 + $0xaa] sm:$0xff]
      %v855 = vld [vmem:[%s246 + $0xb2] sm:$0xff]
      %v856 = vld [vmem:[%s246 + $0xc2] sm:$0xff]
      %v857 = vld [vmem:[%s246 + $0xca] sm:$0xff]
      %v858 = vld [vmem:[%s246 + $0xda] sm:$0xff]
      %v859 = vld [vmem:[%s246 + $0xe2] sm:$0xff]
      %v860 = vld [vmem:[%s246 + $0xf2] sm:$0xff]
      %v861 = vld [vmem:[%s246 + $0xfa] sm:$0xff]
      %v862 = vld [vmem:[%s246 + $0x10a] sm:$0xff]
      %v863 = vld [vmem:[%s246 + $0x112] sm:$0xff]
      %v864 = vld [vmem:[%s246 + $0x122] sm:$0xff]
      %v865 = vld [vmem:[%s246 + $0x12a] sm:$0xff]
      %v866 = vld [vmem:[%s246 + $0x13a] sm:$0xff]
      %v867 = vld [vmem:[%s246 + $0x142] sm:$0xff]
      %v868 = vld [vmem:[%s246 + $0x152] sm:$0xff]
      %v869 = vld [vmem:[%s246 + $0x15a] sm:$0xff]
      %v870 = vld [vmem:[%s246 + $0x16a] sm:$0xff]
      %v871 = vld [vmem:[%s246 + $0x172] sm:$0xff]
      %v872 = vld [vmem:[%s246 + $0x182] sm:$0xff]
      %v873 = vld [vmem:[%s246 + $0x18a] sm:$0xff]
      %v874 = vld [vmem:[%s246 + $0x19a] sm:$0xff]
      %v875 = vld [vmem:[%s246 + $0x1a2] sm:$0xff]
      %s876 = scalar_lea.vmem %s250, 16
      %v877 = vld [vmem:[%s876] sm:$0xff]
      %v879 = vsel %vm313, %v877, 0
      %v882 = vsel %vm313, %v840, 0
      %v885 = vsel %vm313, %v841, 0
      %v888 = vsel %vm313, %v842, 0
      %v891 = vsel %vm313, %v843, 0
      %v894 = vsel %vm313, %v844, 0
      %v897 = vsel %vm313, %v845, 0
      %v900 = vsel %vm313, %v846, 0
      %v903 = vsel %vm313, %v847, 0
      %v906 = vsel %vm313, %v848, 0
      %v909 = vsel %vm313, %v849, 0
      %v912 = vsel %vm313, %v850, 0
      %v915 = vsel %vm313, %v851, 0
      %v918 = vsel %vm313, %v852, 0
      %v921 = vsel %vm313, %v853, 0
      %v924 = vsel %vm313, %v854, 0
      %v927 = vsel %vm313, %v855, 0
      %v930 = vsel %vm313, %v856, 0
      %v933 = vsel %vm313, %v857, 0
      %v936 = vsel %vm313, %v858, 0
      %v939 = vsel %vm313, %v859, 0
      %v942 = vsel %vm313, %v860, 0
      %v945 = vsel %vm313, %v861, 0
      %v948 = vsel %vm313, %v862, 0
      %v951 = vsel %vm313, %v863, 0
      %v954 = vsel %vm313, %v864, 0
      %v957 = vsel %vm313, %v865, 0
      %v960 = vsel %vm313, %v866, 0
      %v963 = vsel %vm313, %v867, 0
      %v966 = vsel %vm313, %v868, 0
      %v969 = vsel %vm313, %v869, 0
      %v972 = vsel %vm313, %v870, 0
      %v975 = vsel %vm313, %v871, 0
      %977 = vmatpush.xpose.msra.mxu0 %v927
      %978 = vmatpush.xpose.msra.mxu0 %v924
      %979 = vmatpush.xpose.msra.mxu0 %v921
      %980 = vmatpush.xpose.msra.mxu0 %v918
      %981 = vmatpush.xpose.msra.mxu0 %v915
      %982 = vmatpush.xpose.msra.mxu0 %v912
      %983 = vmatpush.xpose.msra.mxu0 %v909
      %984 = vmatpush.xpose.msra.mxu0 %v906
      %985 = vmatpush.xpose.msra.mxu0 %v903
      %986 = vmatpush.xpose.msra.mxu0 %v900
      %987 = vmatpush.xpose.msra.mxu0 %v897
      %988 = vmatpush.xpose.msra.mxu0 %v894
      %989 = vmatpush.xpose.msra.mxu0 %v891
      %990 = vmatpush.xpose.msra.mxu0 %v888
      %991 = vmatpush.xpose.msra.mxu0 %v885
      %992 = vmatpush.xpose.msra.mxu0 %v882
      %993 = vmatmul.f32.gmra.mxu0 %v879
      %v994 = vpop.f32.mrf.mxu0
      %v995 = vadd.f32 0.0, %v994
      %996 = vdwg.mxu0
      %997 = vmatpush.xpose.msra.mxu0 %v975
      %998 = vmatpush.xpose.msra.mxu0 %v972
      %999 = vmatpush.xpose.msra.mxu0 %v969
      %1000 = vmatpush.xpose.msra.mxu0 %v966
      %1001 = vmatpush.xpose.msra.mxu0 %v963
      %1002 = vmatpush.xpose.msra.mxu0 %v960
      %1003 = vmatpush.xpose.msra.mxu0 %v957
      %1004 = vmatpush.xpose.msra.mxu0 %v954
      %1005 = vmatpush.xpose.msra.mxu0 %v951
      %1006 = vmatpush.xpose.msra.mxu0 %v948
      %1007 = vmatpush.xpose.msra.mxu0 %v945
      %1008 = vmatpush.xpose.msra.mxu0 %v942
      %1009 = vmatpush.xpose.msra.mxu0 %v939
      %1010 = vmatpush.xpose.msra.mxu0 %v936
      %1011 = vmatpush.xpose.msra.mxu0 %v933
      %1012 = vmatpush.xpose.msra.mxu0 %v930
      %1013 = vmatmul.f32.gmra.mxu0 %v879
      %v1014 = vpop.f32.mrf.mxu0
      %v1015 = vadd.f32 0.0, %v1014
      %1016 = vdwg.mxu0
      %v1017 = vadd.f32 %v838, %v995
      %v1018 = vadd.f32 %v839, %v1015
      %s1019 = scalar_lea.vmem %s250, 40
      %v1020 = vld [vmem:[%s1019] sm:$0xff]
      %v1022 = vsel %vm313, %v1020, 0
      %v1025 = vsel %vm313, %v872, 0
      %v1028 = vsel %vm313, %v873, 0
      %1030 = vmatpush.xpose.msra.mxu0 %v933
      %1031 = vmatpush.xpose.msra.mxu0 %v930
      %1032 = vmatpush.xpose.msra.mxu0 %v927
      %1033 = vmatpush.xpose.msra.mxu0 %v924
      %1034 = vmatpush.xpose.msra.mxu0 %v921
      %1035 = vmatpush.xpose.msra.mxu0 %v918
      %1036 = vmatpush.xpose.msra.mxu0 %v915
      %1037 = vmatpush.xpose.msra.mxu0 %v912
      %1038 = vmatpush.xpose.msra.mxu0 %v909
      %1039 = vmatpush.xpose.msra.mxu0 %v906
      %1040 = vmatpush.xpose.msra.mxu0 %v903
      %1041 = vmatpush.xpose.msra.mxu0 %v900
      %1042 = vmatpush.xpose.msra.mxu0 %v897
      %1043 = vmatpush.xpose.msra.mxu0 %v894
      %1044 = vmatpush.xpose.msra.mxu0 %v891
      %1045 = vmatpush.xpose.msra.mxu0 %v888
      %1046 = vmatmul.f32.gmra.mxu0 %v1022
      %v1047 = vpop.f32.mrf.mxu0
      %v1048 = vadd.f32 0.0, %v1047
      %1049 = vdwg.mxu0
      %1050 = vmatpush.xpose.msra.mxu0 %v1028
      %1051 = vmatpush.xpose.msra.mxu0 %v1025
      %1052 = vmatpush.xpose.msra.mxu0 %v975
      %1053 = vmatpush.xpose.msra.mxu0 %v972
      %1054 = vmatpush.xpose.msra.mxu0 %v969
      %1055 = vmatpush.xpose.msra.mxu0 %v966
      %1056 = vmatpush.xpose.msra.mxu0 %v963
      %1057 = vmatpush.xpose.msra.mxu0 %v960
      %1058 = vmatpush.xpose.msra.mxu0 %v957
      %1059 = vmatpush.xpose.msra.mxu0 %v954
      %1060 = vmatpush.xpose.msra.mxu0 %v951
      %1061 = vmatpush.xpose.msra.mxu0 %v948
      %1062 = vmatpush.xpose.msra.mxu0 %v945
      %1063 = vmatpush.xpose.msra.mxu0 %v942
      %1064 = vmatpush.xpose.msra.mxu0 %v939
      %1065 = vmatpush.xpose.msra.mxu0 %v936
      %1066 = vmatmul.f32.gmra.mxu0 %v1022
      %v1067 = vpop.f32.mrf.mxu0
      %v1068 = vadd.f32 0.0, %v1067
      %1069 = vdwg.mxu0
      %v1070 = vadd.f32 %v1017, %v1048
      %v1071 = vadd.f32 %v1018, %v1068
      %s1072 = scalar_lea.vmem %s250, 64
      %v1073 = vld [vmem:[%s1072] sm:$0xff]
      %v1075 = vsel %vm313, %v1073, 0
      %v1078 = vsel %vm313, %v874, 0
      %v1081 = vsel %vm313, %v875, 0
      %1083 = vmatpush.xpose.msra.mxu0 %v939
      %1084 = vmatpush.xpose.msra.mxu0 %v936
      %1085 = vmatpush.xpose.msra.mxu0 %v933
      %1086 = vmatpush.xpose.msra.mxu0 %v930
      %1087 = vmatpush.xpose.msra.mxu0 %v927
      %1088 = vmatpush.xpose.msra.mxu0 %v924
      %1089 = vmatpush.xpose.msra.mxu0 %v921
      %1090 = vmatpush.xpose.msra.mxu0 %v918
      %1091 = vmatpush.xpose.msra.mxu0 %v915
      %1092 = vmatpush.xpose.msra.mxu0 %v912
      %1093 = vmatpush.xpose.msra.mxu0 %v909
      %1094 = vmatpush.xpose.msra.mxu0 %v906
      %1095 = vmatpush.xpose.msra.mxu0 %v903
      %1096 = vmatpush.xpose.msra.mxu0 %v900
      %1097 = vmatpush.xpose.msra.mxu0 %v897
      %1098 = vmatpush.xpose.msra.mxu0 %v894
      %1099 = vmatmul.f32.gmra.mxu0 %v1075
      %v1100 = vpop.f32.mrf.mxu0
      %v1101 = vadd.f32 0.0, %v1100
      %1102 = vdwg.mxu0
      %1103 = vmatpush.xpose.msra.mxu0 %v1081
      %1104 = vmatpush.xpose.msra.mxu0 %v1078
      %1105 = vmatpush.xpose.msra.mxu0 %v1028
      %1106 = vmatpush.xpose.msra.mxu0 %v1025
      %1107 = vmatpush.xpose.msra.mxu0 %v975
      %1108 = vmatpush.xpose.msra.mxu0 %v972
      %1109 = vmatpush.xpose.msra.mxu0 %v969
      %1110 = vmatpush.xpose.msra.mxu0 %v966
      %1111 = vmatpush.xpose.msra.mxu0 %v963
      %1112 = vmatpush.xpose.msra.mxu0 %v960
      %1113 = vmatpush.xpose.msra.mxu0 %v957
      %1114 = vmatpush.xpose.msra.mxu0 %v954
      %1115 = vmatpush.xpose.msra.mxu0 %v951
      %1116 = vmatpush.xpose.msra.mxu0 %v948
      %1117 = vmatpush.xpose.msra.mxu0 %v945
      %1118 = vmatpush.xpose.msra.mxu0 %v942
      %1119 = vmatmul.f32.gmra.mxu0 %v1075
      %v1120 = vpop.f32.mrf.mxu0
      %v1121 = vadd.f32 0.0, %v1120
      %1122 = vdwg.mxu0
      %v1123 = vadd.f32 %v1070, %v1101
      %v1124 = vadd.f32 %v1071, %v1121
      %1125 = vst [vmem:[%s259] sm:$0xff] %v1123
      %1126 = vst [vmem:[%s259 + $0x8] sm:$0xff] %v1124
      %v1127 = vadd.f32 %v1123, %v1124
      %1128 = vadd.xlane.f32.xlu0 %v1127
      %v1129 = vpop.xlane.xlu0 %1128
      %vm1130 = vcmask 7168
      %1131 = vst.msk [vmem:[%s266] sm:$0xff] %vm1130, %v1129
      %v1132 = vmul.f32 %v1123, %v1123
      %v1133 = vmul.f32 %v1124, %v1124
      %v1134 = vadd.f32 %v1132, %v1133
      %1135 = vadd.xlane.f32.xlu0 %v1134
      %v1136 = vpop.xlane.xlu0 %1135
      %1137 = vst.msk [vmem:[%s273] sm:$0xff] %vm1130, %v1136
      %p1138 = scmp.lt.s32.totalorder %s20, 1
      %s1139 = scalar_select %p1138, %s20, 1
      %p1140 = scmp.lt.s32.totalorder %s21, 0
      %s1141 = scalar_select %p1140, %s21, 0
      %s1142 = smul.addr %s1141, 2
      %s1143 = smul.addr %s1139, 2
      %s1144 = sadd.s32 %s1142, %s1143
      %s1145 = smul.addr %s1144, 8
      %s1146 = scalar_lea.vmem %s2, %s1145
      %p1147 = scmp.lt.s32.totalorder %s20, 1
      %s1148 = scalar_select %p1147, %s20, 1
      %p1149 = scmp.lt.s32.totalorder %s21, 0
      %s1150 = scalar_select %p1149, %s21, 0
      %s1151 = sadd.s32 %s1150, %s1148
      %s1152 = smul.addr %s1151, 8
      %s1153 = scalar_lea.vmem %s3, %s1152
      %p1154 = scmp.lt.s32.totalorder %s20, 1
      %s1155 = scalar_select %p1154, %s20, 1
      %p1156 = scmp.lt.s32.totalorder %s21, 0
      %s1157 = scalar_select %p1156, %s21, 0
      %s1158 = sadd.s32 %s1157, %s1155
      %s1159 = smul.addr %s1158, 8
      %s1160 = scalar_lea.vmem %s4, %s1159
      // Predicated region
      $region29: #{spade_conv2d.2} parent=27 // pred_check
        %p1161 = pneg %p100
      $region30: #{spade_conv2d.2} parent=27 // pred_check_branch
        %1163 = sbr.rel (%p1161) target = $region32
      $region31: #{spade_conv2d.2} parent=27 // pred_region
        _
      $region32: #{spade_conv2d.2} parent=27 // pred_fallthru
        _
      // Predicated region
      $region33: #{spade_conv2d.2} parent=27 // pred_check
        %p1164 = pneg %p128
      $region34: #{spade_conv2d.2} parent=27 // pred_check_branch
        %1166 = sbr.rel (%p1164) target = $region36
      $region35: #{spade_conv2d.2} parent=27 // pred_region
        _
      $region36: #{spade_conv2d.2} parent=27 // pred_fallthru
        _
      // Predicated region
      $region37: #{spade_conv2d.2} parent=27 // pred_check
        %p1167 = pneg %p156
      $region38: #{spade_conv2d.2} parent=27 // pred_check_branch
        %1169 = sbr.rel (%p1167) target = $region40
      $region39: #{spade_conv2d.2} parent=27 // pred_region
        _
      $region40: #{spade_conv2d.2} parent=27 // pred_fallthru
        _
    $region28: #{spade_conv2d.2} parent=5 // pred_fallthru
      _
    %p1170 = scmp.le.s32.totalorder 2, %s11
    // Predicated region
    $region41: #{spade_conv2d.2} parent=5 // pred_check
      %p1171 = pneg %p1170
    $region42: #{spade_conv2d.2} parent=5 // pred_check_branch
      %1173 = sbr.rel (%p1171) target = $region44
    $region43: #{spade_conv2d.2} parent=5 // pred_region
      %s1174 = ssub.s32 %s11, 2
      // Predicated region
      $region45: #{spade_conv2d.2} parent=43 // pred_check
        %p1175 = pneg %p106
      $region46: #{spade_conv2d.2} parent=43 // pred_check_branch
        %1177 = sbr.rel (%p1175) target = $region48
      $region47: #{spade_conv2d.2} parent=43 // pred_region
        %p1178 = scmp.lt.s32.totalorder %s22, 1
        %s1179 = scalar_select %p1178, %s22, 1
        %p1180 = scmp.lt.s32.totalorder %s23, 0
        %s1181 = scalar_select %p1180, %s23, 0
        %s1182 = smul.addr %s1181, 2
        %s1183 = smul.addr %s1179, 2
        %s1184 = sadd.s32 %s1182, %s1183
        %s1185 = smul.addr %s1184, 8
        %s1186 = scalar_lea.vmem %s2, %s1185
      $region48: #{spade_conv2d.2} parent=43 // pred_fallthru
        _
      // Predicated region
      $region49: #{spade_conv2d.2} parent=43 // pred_check
        %p1187 = pneg %p134
      $region50: #{spade_conv2d.2} parent=43 // pred_check_branch
        %1189 = sbr.rel (%p1187) target = $region52
      $region51: #{spade_conv2d.2} parent=43 // pred_region
        %p1190 = scmp.lt.s32.totalorder %s22, 1
        %s1191 = scalar_select %p1190, %s22, 1
        %p1192 = scmp.lt.s32.totalorder %s23, 0
        %s1193 = scalar_select %p1192, %s23, 0
        %s1194 = sadd.s32 %s1193, %s1191
        %s1195 = smul.addr %s1194, 8
        %s1196 = scalar_lea.vmem %s3, %s1195
      $region52: #{spade_conv2d.2} parent=43 // pred_fallthru
        _
      // Predicated region
      $region53: #{spade_conv2d.2} parent=43 // pred_check
        %p1197 = pneg %p162
      $region54: #{spade_conv2d.2} parent=43 // pred_check_branch
        %1199 = sbr.rel (%p1197) target = $region56
      $region55: #{spade_conv2d.2} parent=43 // pred_region
        %p1200 = scmp.lt.s32.totalorder %s22, 1
        %s1201 = scalar_select %p1200, %s22, 1
        %p1202 = scmp.lt.s32.totalorder %s23, 0
        %s1203 = scalar_select %p1202, %s23, 0
        %s1204 = sadd.s32 %s1203, %s1201
        %s1205 = smul.addr %s1204, 8
        %s1206 = scalar_lea.vmem %s4, %s1205
      $region56: #{spade_conv2d.2} parent=43 // pred_fallthru
        _
    $region44: #{spade_conv2d.2} parent=5 // pred_fallthru
      _
  $region6: #{spade_conv2d.2} parent=0 // loop_footer
    %s15 = sadd.s32 1, %s11
  $region7: #{spade_conv2d.2} parent=0 // loop_footer_branch
    %10 = sbr.rel target = $region3
  $region8: #{spade_conv2d.2} parent=0 // loop_exit
    _

</llo_original>
